<compile_context>
chip_gen: v7x
topology: tpu7x:2x2x1
jax: 0.10.0
libtpu: 0.0.40
codegen_flags: <defaults>
</compile_context>

<pallas_src>
import functools

import jax
import jax.numpy as jnp
from jax import lax
from jax.experimental import pallas as pl
from jax.experimental.pallas import tpu as pltpu

EPS = 1e-12          # F.normalize default eps
_NEG_LARGE = -1e30   # bias for padded (fake) clusters -> softmax weight == 0


def _round_up(x, m):
    return (x + m - 1) // m * m


def _vmem_capacity_bytes():
    try:
        info = pltpu.get_tpu_info()
        cap = getattr(info, "vmem_capacity_bytes", None)
        if cap:
            return int(cap)
    except Exception:
        pass
    return 64 * 1024 * 1024   # conservative default (v7x per-TC VMEM)


def _netvlad_kernel(x_ref, w_ref, b_ref, cent_ref, o_ref, vlad_acc, asum_acc, *,
                    num_k, s_valid, s_tile, mask_s, assign_dtype, agg_dtype):
    """One (batch, S-tile) grid step.  x stays in its native channel-major layout.

    x_ref:    [1, Cp, TS] f32           descriptors for this spatial tile
    w_ref:    [Kp, Cp]    assign_dtype  2*alpha*centroids (K, C zero-padded)
    b_ref:    [Kp, 1]     f32           conv bias, padded clusters get -1e30
    cent_ref: [Kp, Cp]    f32           raw centroids, padded rows/cols zero
    o_ref:    [1, K, Cp]  f32           final VLAD (written on the last S tile)
    vlad_acc: [Kp, Cp]    f32 scratch   running sum_s a[k,s]*xn[c,s]
    asum_acc: [Kp, 1]     f32 scratch   running sum_s a[k,s]
    """
    s_idx = pl.program_id(1)

    @pl.when(s_idx == 0)
    def _init():
        vlad_acc[...] = jnp.zeros_like(vlad_acc)
        asum_acc[...] = jnp.zeros_like(asum_acc)

    x = x_ref[0]                                                  # [Cp, TS]

    # 1) descriptor-wise L2 normalization over channels (sublane axis):
    #    single rsqrt on the narrow [1, TS] row, sublane-broadcast multiply.
    #    rsqrt(max(ss, eps^2)) == 1 / max(||x||, eps)  (sqrt is monotone).
    inv_norm = lax.rsqrt(jnp.maximum(jnp.sum(x * x, axis=0, keepdims=True),
                                     EPS * EPS))                  # [1, TS]
    xn = x * inv_norm                                             # [Cp, TS] f32

    # 2) 1x1 conv == [Kp, Cp] @ [Cp, TS] on the MXU (NN form, f32 accumulate).
    logits = jnp.dot(w_ref[...], xn.astype(assign_dtype),
                     preferred_element_type=jnp.float32) + b_ref[...]   # [Kp, TS]

    # 3) softmax over clusters (sublane axis); padded clusters -> exactly 0.
    m = jnp.max(logits, axis=0, keepdims=True)
    e = jnp.exp(logits - m)
    a = e * pl.reciprocal(jnp.sum(e, axis=0, keepdims=True), approx=False)

    if mask_s:
        # zero the assignments of spatial padding columns (only compiled when
        # the wrapper padded S up to a tile multiple).
        col = s_idx * s_tile + lax.broadcasted_iota(jnp.int32, (1, s_tile), 1)
        a = jnp.where(col < s_valid, a, 0.0)

    # 4) partial VLAD aggregation: [Kp, TS] . [Cp, TS]^T contracted over the
    #    spatial tile (NT dimension numbers -> no operand transpose needed).
    vlad_acc[...] += lax.dot_general(
        a.astype(agg_dtype), xn.astype(agg_dtype),
        dimension_numbers=(((1,), (1,)), ((), ())),
        preferred_element_type=jnp.float32)                       # [Kp, Cp]
    asum_acc[...] += jnp.sum(a, axis=1, keepdims=True)            # [Kp, 1]

    @pl.when(s_idx == pl.num_programs(1) - 1)
    def _finalize():
        # residual subtraction ([Kp,1] broadcast over lanes)
        vlad = vlad_acc[...] - asum_acc[...] * cent_ref[...]      # [Kp, Cp]
        # 5) intra-normalization over C (padded rows/cols stay exactly zero)
        vlad = vlad * lax.rsqrt(jnp.maximum(
            jnp.sum(vlad * vlad, axis=-1, keepdims=True), EPS * EPS))
        # 6) global L2 normalization over the flattened K*C vector
        vlad = vlad * lax.rsqrt(jnp.maximum(jnp.sum(vlad * vlad), EPS * EPS))
        o_ref[0] = vlad[:num_k].astype(o_ref.dtype)


def netvlad_v3_forward(x_nchw, centroids, alpha=100.0, *,
                       assign_dtype=jnp.float32, agg_dtype=jnp.bfloat16,
                       s_tile=None):
    """NetVLAD_v3 forward.

    x_nchw:       [N, C, H, W] float32
    centroids:    [K, C] float32
    assign_dtype: MXU-input dtype of the assignment (logits) matmul.  Kept f32
                  by default: alpha=100 makes softmax near one-hot and bf16
                  logits can flip assignments.
    agg_dtype:    MXU-input dtype of the aggregation matmul (default bf16;
                  accumulation and every normalization stay f32).
    s_tile:       spatial tile size override (multiple of 128 if < H*W).
    """
    N, C, H, W = x_nchw.shape
    K = centroids.shape[0]
    S = H * W

    centroids = centroids.astype(jnp.float32)

    Kp = _round_up(max(K, 1), 128)   # clusters padded to the 128-lane width
    Cp = _round_up(max(C, 1), 128)   # feature dim padded for lane-dense output

    # x consumed in its native NCHW layout as [N, C, S]: pure reshape, no HBM
    # transpose pass (channels ride the sublane axis inside the kernel).
    x_ncs = x_nchw.reshape(N, C, S).astype(jnp.float32)
    if Cp != C:
        # Lane-density pad of a small feature axis; zero channels are exactly
        # neutral to the norm / logits / residual.
        x_ncs = jnp.pad(x_ncs, ((0, 0), (0, Cp - C), (0, 0)))

    # ---- per-generation spatial tiling / VMEM budget --------------------------
    vmem_cap = _vmem_capacity_bytes()
    budget = int(vmem_cap * 0.6)

    def _ws(ts):  # rough per-step VMEM working set (bytes)
        return (2 * Cp * ts * 4            # double-buffered x tile (f32)
                + Cp * ts * 8              # xn + low-precision copies
                + 4 * Kp * ts * 4          # logits / exp / a
                + 6 * Kp * Cp * 4)         # vlad_acc + (w, bias, cent) buffers

    if s_tile is None:
        if _ws(S) <= budget:
            s_tile = S                     # single tile: no padding, no mask
        else:
            s_tile = 4096
            while s_tile > 128 and _ws(s_tile) > budget:
                s_tile //= 2
    if s_tile >= S:
        s_tile, s_pad = S, S
    else:
        assert s_tile % 128 == 0, "tiled s_tile must be a multiple of 128 lanes"
        s_pad = _round_up(S, s_tile)

    if s_pad != S:
        # TODO(synk): rare fallback for huge, awkward H*W — jnp.pad is one extra
        # HBM pass over x; padded columns are masked inside the kernel.
        x_ncs = jnp.pad(x_ncs, ((0, 0), (0, 0), (0, s_pad - S)))
    num_s = s_pad // s_tile

    # ---- loop-invariant weight prep, hoisted out of the kernel ----------------
    w = jnp.zeros((Kp, Cp), jnp.float32).at[:K, :C].set(2.0 * alpha * centroids)
    # module uses -alpha * ||c||  (L2 norm, NOT squared) — matches the PyTorch
    # source: `-self.alpha * self.centroids.norm(dim=1)`.
    bias = jnp.full((Kp, 1), _NEG_LARGE, jnp.float32).at[:K, 0].set(
        -alpha * jnp.sqrt(jnp.sum(centroids * centroids, axis=-1)))
    cent_p = jnp.zeros((Kp, Cp), jnp.float32).at[:K, :C].set(centroids)

    kernel = functools.partial(
        _netvlad_kernel, num_k=K, s_valid=S, s_tile=s_tile, mask_s=(s_pad != S),
        assign_dtype=assign_dtype, agg_dtype=agg_dtype)

    vmem_limit = min(int(vmem_cap * 0.9), 112 * 1024 * 1024)

    out_nkc = pl.pallas_call(
        kernel,
        out_shape=jax.ShapeDtypeStruct((N, K, Cp), jnp.float32),
        grid_spec=pltpu.PrefetchScalarGridSpec(
            num_scalar_prefetch=0,
            grid=(N, num_s),
            in_specs=[
                pl.BlockSpec((1, Cp, s_tile), lambda n, s: (n, 0, s)),  # x tile
                pl.BlockSpec((Kp, Cp), lambda n, s: (0, 0)),            # 2*alpha*centroids
                pl.BlockSpec((Kp, 1), lambda n, s: (0, 0)),             # conv bias
                pl.BlockSpec((Kp, Cp), lambda n, s: (0, 0)),            # raw centroids
            ],
            out_specs=pl.BlockSpec((1, K, Cp), lambda n, s: (n, 0, 0)),
            scratch_shapes=[
                pltpu.VMEM((Kp, Cp), jnp.float32),   # vlad accumulator
                pltpu.VMEM((Kp, 1), jnp.float32),    # a_sum accumulator
            ],
        ),
        compiler_params=pltpu.CompilerParams(
            dimension_semantics=("parallel", "arbitrary"),
            vmem_limit_bytes=vmem_limit,
        ),
    )(x_ncs, w.astype(assign_dtype), bias, cent_p)

    if Cp != C:
        out_nkc = out_nkc[:, :, :C]
    return out_nkc.reshape(N, K * C)


def _reference(x_nchw, centroids, alpha=100.0):
    """Pure-JAX reference mirroring the PyTorch forward, for sanity checking."""
    N, C, H, W = x_nchw.shape
    S = H * W
    xn = x_nchw / jnp.maximum(
        jnp.sqrt(jnp.sum(x_nchw * x_nchw, axis=1, keepdims=True)), EPS)
    xf = xn.reshape(N, C, S)                                         # [N, C, S]
    bias = -alpha * jnp.sqrt(jnp.sum(centroids * centroids, axis=-1))
    logits = jnp.einsum("ncs,kc->nks", xf, 2.0 * alpha * centroids) + bias[None, :, None]
    a = jax.nn.softmax(logits, axis=1)                               # [N, K, S]
    vlad = (jnp.einsum("nks,ncs->nkc", a, xf)
            - jnp.sum(a, axis=-1)[..., None] * centroids[None])
    vlad = vlad / jnp.maximum(
        jnp.sqrt(jnp.sum(vlad * vlad, axis=2, keepdims=True)), EPS)
    vlad = vlad.reshape(N, -1)
    vlad = vlad / jnp.maximum(
        jnp.sqrt(jnp.sum(vlad * vlad, axis=1, keepdims=True)), EPS)
    return vlad


if __name__ == "__main__":
    alpha = 100.0
    key = jax.random.PRNGKey(0)
    k1, k2, k3, k4 = jax.random.split(key, 4)

    # --- config A: module-default descriptor dim (dim=128), small spatial map.
    N, C, H, W, K = 2, 128, 8, 8, 32
    x = jax.random.normal(k1, (N, C, H, W), dtype=jnp.float32)
    cents = jax.random.uniform(k2, (K, C), dtype=jnp.float32)        # torch.rand init
    ref = _reference(x, cents, alpha)

    # f32 aggregation path: module-exact numerics.
    out_f32 = jax.block_until_ready(
        netvlad_v3_forward(x, cents, alpha, agg_dtype=jnp.float32))
    assert out_f32.shape == (N, K * C)
    err = float(jnp.max(jnp.abs(out_f32 - ref)))
    assert jnp.allclose(out_f32, ref, atol=2e-4, rtol=2e-4), err

    # default path: bf16 MXU inputs on the aggregation matmul (f32 softmax /
    # accumulation / norms).  alpha=100 makes assignments near one-hot, so only
    # check it runs and is finite with the right shape.
    out_def = jax.block_until_ready(netvlad_v3_forward(x, cents, alpha))
    assert out_def.shape == (N, K * C)
    assert bool(jnp.all(jnp.isfinite(out_def)))

    # --- config B: awkward C / S -> exercises the C lane-padding, S padding +
    # in-kernel mask, and the multi-tile accumulation path (s_tile=128 < S=144).
    N2, C2, H2, W2, K2 = 1, 32, 12, 12, 16
    x2 = jax.random.normal(k3, (N2, C2, H2, W2), dtype=jnp.float32)
    cents2 = jax.random.uniform(k4, (K2, C2), dtype=jnp.float32)
    ref2 = _reference(x2, cents2, alpha)
    out2 = jax.block_until_ready(
        netvlad_v3_forward(x2, cents2, alpha, agg_dtype=jnp.float32, s_tile=128))
    assert out2.shape == (N2, K2 * C2)
    err2 = float(jnp.max(jnp.abs(out2 - ref2)))
    assert jnp.allclose(out2, ref2, atol=2e-4, rtol=2e-4), err2

    print("KERNEL_OK")
</pallas_src>

<mosaic_0001>
module attributes {stable_mosaic.version = 11 : i64} {
  func.func @_netvlad_kernel(%arg0: i32, %arg1: i32, %arg2: memref<1x128x64xf32, #tpu.memory_space<vmem>>, %arg3: memref<128x128xf32, #tpu.memory_space<vmem>>, %arg4: memref<128x1xf32, #tpu.memory_space<vmem>>, %arg5: memref<128x128xf32, #tpu.memory_space<vmem>>, %arg6: memref<1x32x128xf32, #tpu.memory_space<vmem>>, %arg7: memref<128x128xf32, #tpu.memory_space<vmem>>, %arg8: memref<128x1xf32, #tpu.memory_space<vmem>>) attributes {dimension_semantics = [#tpu.dimension_semantics<parallel>, #tpu.dimension_semantics<arbitrary>], iteration_bounds = array<i64: 2, 1>, scalar_prefetch = 0 : i64, scratch_operands = 2 : i64, tpu.core_type = #tpu.core_type<tc>, window_params = [{transform_indices = @transform_0, window_bounds = array<i64: 1, 128, 64>}, {pipeline_mode = #tpu.pipeline_mode<synchronous>, transform_indices = @transform_1, window_bounds = array<i64: 128, 128>}, {pipeline_mode = #tpu.pipeline_mode<synchronous>, transform_indices = @transform_2, window_bounds = array<i64: 128, 1>}, {pipeline_mode = #tpu.pipeline_mode<synchronous>, transform_indices = @transform_3, window_bounds = array<i64: 128, 128>}, {transform_indices = @transform_4, window_bounds = array<i64: 1, 32, 128>}]} {
    %c0_i32 = arith.constant 0 : i32
    %0 = arith.cmpi eq, %arg1, %c0_i32 : i32
    %1 = arith.extui %0 : i1 to i32
    %c0_i32_0 = arith.constant 0 : i32
    %2 = arith.cmpi ne, %1, %c0_i32_0 : i32
    scf.if %2 {
      %cst_23 = arith.constant 0.000000e+00 : f32
      %40 = vector.broadcast %cst_23 : f32 to vector<128x128xf32>
      %c0_24 = arith.constant 0 : index
      %c0_25 = arith.constant 0 : index
      %41 = vector.load %arg7[%c0_24, %c0_25] : memref<128x128xf32, #tpu.memory_space<vmem>>, vector<128x128xf32>
      tpu.vector_store %arg7[%c0_24, %c0_25], %40 {strides = array<i32>} : memref<128x128xf32, #tpu.memory_space<vmem>>, vector<128x128xf32>,
      %cst_26 = arith.constant 0.000000e+00 : f32
      %42 = vector.broadcast %cst_26 : f32 to vector<128x1xf32>
      %c0_27 = arith.constant 0 : index
      %c0_28 = arith.constant 0 : index
      %43 = vector.load %arg8[%c0_27, %c0_28] : memref<128x1xf32, #tpu.memory_space<vmem>>, vector<128x1xf32>
      tpu.vector_store %arg8[%c0_27, %c0_28], %42 {strides = array<i32>} : memref<128x1xf32, #tpu.memory_space<vmem>>, vector<128x1xf32>,
    } else {
    }
    %c0 = arith.constant 0 : index
    %c0_1 = arith.constant 0 : index
    %c0_2 = arith.constant 0 : index
    %3 = vector.load %arg2[%c0, %c0_1, %c0_2] : memref<1x128x64xf32, #tpu.memory_space<vmem>>, vector<1x128x64xf32>
    %4 = vector.shape_cast %3 : vector<1x128x64xf32> to vector<128x64xf32>
    %5 = arith.mulf %4, %4 : vector<128x64xf32>
    %cst = arith.constant dense<0.000000e+00> : vector<64xf32>
    %6 = vector.multi_reduction <add>, %5, %cst [0] : vector<128x64xf32> to vector<64xf32>
    %7 = vector.shape_cast %6 : vector<64xf32> to vector<1x64xf32>
    %cst_3 = arith.constant 1.000000e-24 : f32
    %8 = vector.broadcast %cst_3 : f32 to vector<1x64xf32>
    %9 = arith.maximumf %7, %8 : vector<1x64xf32>
    %10 = math.rsqrt %9 : vector<1x64xf32>
    %11 = vector.broadcast %10 : vector<1x64xf32> to vector<128x64xf32>
    %12 = arith.mulf %4, %11 : vector<128x64xf32>
    %c0_4 = arith.constant 0 : index
    %c0_5 = arith.constant 0 : index
    %13 = vector.load %arg3[%c0_4, %c0_5] : memref<128x128xf32, #tpu.memory_space<vmem>>, vector<128x128xf32>
    %cst_6 = arith.constant dense<0.000000e+00> : vector<128x64xf32>
    %14 = tpu.matmul %13, %12, %cst_6 {dimension_numbers = #tpu.dot_dimension_numbers<[1], [0], [0], [1], [0, 0, 1, 1], [], []>} : vector<128x128xf32>, vector<128x64xf32>, vector<128x64xf32> -> vector<128x64xf32>
    %c0_7 = arith.constant 0 : index
    %c0_8 = arith.constant 0 : index
    %15 = vector.load %arg4[%c0_7, %c0_8] : memref<128x1xf32, #tpu.memory_space<vmem>>, vector<128x1xf32>
    %16 = vector.broadcast %15 : vector<128x1xf32> to vector<128x64xf32>
    %17 = arith.addf %14, %16 : vector<128x64xf32>
    %cst_9 = arith.constant dense<0xFF800000> : vector<64xf32>
    %18 = vector.multi_reduction <maximumf>, %17, %cst_9 [0] : vector<128x64xf32> to vector<64xf32>
    %19 = vector.shape_cast %18 : vector<64xf32> to vector<1x64xf32>
    %20 = vector.broadcast %19 : vector<1x64xf32> to vector<128x64xf32>
    %21 = arith.subf %17, %20 : vector<128x64xf32>
    %22 = math.exp %21 : vector<128x64xf32>
    %cst_10 = arith.constant dense<0.000000e+00> : vector<64xf32>
    %23 = vector.multi_reduction <add>, %22, %cst_10 [0] : vector<128x64xf32> to vector<64xf32>
    %24 = vector.shape_cast %23 : vector<64xf32> to vector<1x64xf32>
    %25 = tpu.reciprocal %24 : vector<1x64xf32> -> vector<1x64xf32>
    %26 = vector.broadcast %25 : vector<1x64xf32> to vector<128x64xf32>
    %27 = arith.mulf %22, %26 : vector<128x64xf32>
    %c0_11 = arith.constant 0 : index
    %c0_12 = arith.constant 0 : index
    %28 = vector.load %arg7[%c0_11, %c0_12] : memref<128x128xf32, #tpu.memory_space<vmem>>, vector<128x128xf32>
    %cst_13 = arith.constant dense<0.000000e+00> : vector<128x128xf32>
    %29 = tpu.matmul %27, %12, %cst_13 {dimension_numbers = #tpu.dot_dimension_numbers<[1], [1], [0], [0], [0, 0, 1, 0], [], []>} : vector<128x64xf32>, vector<128x64xf32>, vector<128x128xf32> -> vector<128x128xf32>
    %30 = arith.addf %28, %29 : vector<128x128xf32>
    %c0_14 = arith.constant 0 : index
    %c0_15 = arith.constant 0 : index
    %31 = vector.load %arg7[%c0_14, %c0_15] : memref<128x128xf32, #tpu.memory_space<vmem>>, vector<128x128xf32>
    tpu.vector_store %arg7[%c0_14, %c0_15], %30 {strides = array<i32>} : memref<128x128xf32, #tpu.memory_space<vmem>>, vector<128x128xf32>,
    %c0_16 = arith.constant 0 : index
    %c0_17 = arith.constant 0 : index
    %32 = vector.load %arg8[%c0_16, %c0_17] : memref<128x1xf32, #tpu.memory_space<vmem>>, vector<128x1xf32>
    %cst_18 = arith.constant dense<0.000000e+00> : vector<128xf32>
    %33 = vector.multi_reduction <add>, %27, %cst_18 [1] : vector<128x64xf32> to vector<128xf32>
    %34 = vector.shape_cast %33 : vector<128xf32> to vector<128x1xf32>
    %35 = arith.addf %32, %34 : vector<128x1xf32>
    %c0_19 = arith.constant 0 : index
    %c0_20 = arith.constant 0 : index
    %36 = vector.load %arg8[%c0_19, %c0_20] : memref<128x1xf32, #tpu.memory_space<vmem>>, vector<128x1xf32>
    tpu.vector_store %arg8[%c0_19, %c0_20], %35 {strides = array<i32>} : memref<128x1xf32, #tpu.memory_space<vmem>>, vector<128x1xf32>,
    %c0_i32_21 = arith.constant 0 : i32
    %37 = arith.cmpi eq, %arg1, %c0_i32_21 : i32
    %38 = arith.extui %37 : i1 to i32
    %c0_i32_22 = arith.constant 0 : i32
    %39 = arith.cmpi ne, %38, %c0_i32_22 : i32
    scf.if %39 {
      %c0_23 = arith.constant 0 : index
      %c0_24 = arith.constant 0 : index
      %40 = vector.load %arg7[%c0_23, %c0_24] : memref<128x128xf32, #tpu.memory_space<vmem>>, vector<128x128xf32>
      %c0_25 = arith.constant 0 : index
      %c0_26 = arith.constant 0 : index
      %41 = vector.load %arg8[%c0_25, %c0_26] : memref<128x1xf32, #tpu.memory_space<vmem>>, vector<128x1xf32>
      %c0_27 = arith.constant 0 : index
      %c0_28 = arith.constant 0 : index
      %42 = vector.load %arg5[%c0_27, %c0_28] : memref<128x128xf32, #tpu.memory_space<vmem>>, vector<128x128xf32>
      %43 = vector.broadcast %41 : vector<128x1xf32> to vector<128x128xf32>
      %44 = arith.mulf %43, %42 : vector<128x128xf32>
      %45 = arith.subf %40, %44 : vector<128x128xf32>
      %46 = arith.mulf %45, %45 : vector<128x128xf32>
      %cst_29 = arith.constant dense<0.000000e+00> : vector<128xf32>
      %47 = vector.multi_reduction <add>, %46, %cst_29 [1] : vector<128x128xf32> to vector<128xf32>
      %48 = vector.shape_cast %47 : vector<128xf32> to vector<128x1xf32>
      %cst_30 = arith.constant 1.000000e-24 : f32
      %49 = vector.broadcast %cst_30 : f32 to vector<128x1xf32>
      %50 = arith.maximumf %48, %49 : vector<128x1xf32>
      %51 = math.rsqrt %50 : vector<128x1xf32>
      %52 = vector.broadcast %51 : vector<128x1xf32> to vector<128x128xf32>
      %53 = arith.mulf %45, %52 : vector<128x128xf32>
      %54 = arith.mulf %53, %53 : vector<128x128xf32>
      %55 = vector.shape_cast %54 : vector<128x128xf32> to vector<1x128x128xf32>
      %cst_31 = arith.constant dense<0.000000e+00> : vector<1xf32>
      %56 = vector.multi_reduction <add>, %55, %cst_31 [1, 2] : vector<1x128x128xf32> to vector<1xf32>
      %57 = vector.shape_cast %56 : vector<1xf32> to vector<1x1x1xf32>
      %58 = vector.extract %57[0, 0, 0] : f32 from vector<1x1x1xf32>
      %cst_32 = arith.constant 1.000000e-24 : f32
      %59 = arith.maximumf %58, %cst_32 : f32
      %60 = math.rsqrt %59 : f32
      %61 = vector.broadcast %60 : f32 to vector<128x128xf32>
      %62 = arith.mulf %53, %61 : vector<128x128xf32>
      %63 = vector.extract_strided_slice %62 {offsets = [0, 0], sizes = [32, 128], strides = [1, 1]} : vector<128x128xf32> to vector<32x128xf32>
      %c0_33 = arith.constant 0 : index
      %c0_34 = arith.constant 0 : index
      %c0_35 = arith.constant 0 : index
      %64 = vector.load %arg6[%c0_33, %c0_34, %c0_35] : memref<1x32x128xf32, #tpu.memory_space<vmem>>, vector<1x32x128xf32>
      %65 = vector.shape_cast %64 : vector<1x32x128xf32> to vector<32x128xf32>
      %66 = vector.shape_cast %63 : vector<32x128xf32> to vector<1x32x128xf32>
      tpu.vector_store %arg6[%c0_33, %c0_34, %c0_35], %66 {strides = array<i32>} : memref<1x32x128xf32, #tpu.memory_space<vmem>>, vector<1x32x128xf32>,
    } else {
    }
    return
  }
  func.func @transform_0(%arg0: i32, %arg1: i32) -> (i32, i32, i32) {
    %c0_i32 = arith.constant 0 : i32
    %c0_i32_0 = arith.constant 0 : i32
    return %arg0, %c0_i32, %arg1 : i32, i32, i32
  }
  func.func @transform_1(%arg0: i32, %arg1: i32) -> (i32, i32) {
    %c0_i32 = arith.constant 0 : i32
    %c0_i32_0 = arith.constant 0 : i32
    %c0_i32_1 = arith.constant 0 : i32
    return %c0_i32, %c0_i32_0 : i32, i32
  }
  func.func @transform_2(%arg0: i32, %arg1: i32) -> (i32, i32) {
    %c0_i32 = arith.constant 0 : i32
    %c0_i32_0 = arith.constant 0 : i32
    %c0_i32_1 = arith.constant 0 : i32
    return %c0_i32, %c0_i32_0 : i32, i32
  }
  func.func @transform_3(%arg0: i32, %arg1: i32) -> (i32, i32) {
    %c0_i32 = arith.constant 0 : i32
    %c0_i32_0 = arith.constant 0 : i32
    %c0_i32_1 = arith.constant 0 : i32
    return %c0_i32, %c0_i32_0 : i32, i32
  }
  func.func @transform_4(%arg0: i32, %arg1: i32) -> (i32, i32, i32) {
    %c0_i32 = arith.constant 0 : i32
    %c0_i32_0 = arith.constant 0 : i32
    %c0_i32_1 = arith.constant 0 : i32
    return %arg0, %c0_i32, %c0_i32_0 : i32, i32, i32
  }
}

</mosaic_0001>

<llo_original>
// kernel: tpu_custom_call.1
$region0: #{tpu_custom_call.1}
  #allocation0 [shape = 'u32[]', space=smem, size = 0x4, offset = 0x4, fixed_abs, tag = 'smem constant byte address 0x4 - core index']
  #allocation1 [shape = 'u32[144,128]{1,0:T(1,128)}', space=vmem, size = 0x12000, scoped, tag = 'internal scratch']
  #allocation2 [shape = 'f32[128,128]{1,0:T(8,128)}', space=vmem, size = 0x10000, scoped, tag = 'scratch operand']
  #allocation3 [shape = 'f32[128,1]{1,0:T(8,128)}', space=vmem, size = 0x10000, scoped, tag = 'scratch operand']
  %s0 = inlined_call_operand.vmem [shape: f32[2,128,64], index: 0, kind: input, shape index: {}]
  %s1 = inlined_call_operand.vmem [shape: f32[128,128], index: 1, kind: input, shape index: {}]
  %s2 = inlined_call_operand.vmem [shape: f32[128,1], index: 2, kind: input, shape index: {}]
  %s3 = inlined_call_operand.vmem [shape: f32[128,128], index: 3, kind: input, shape index: {}]
  %s4 = inlined_call_operand.hbm [shape: f32[2,32,128], index: 4, kind: output, shape index: {}]
  %s5 = sld [smem:[#allocation0]]
  $region57: #{tpu_custom_call.1} parent=0
    _
  %s7 = ssub.s32 1, %s5
  %s8 = scalar_select 0, %s7, %s5
  $region1: #{tpu_custom_call.1} parent=0
    #allocation4 [shape = 'u8[32768]{0}', space=vmem, size = 0x8000, scoped, tag = 'output window, operand 0']
    #allocation5 [shape = 's32[2]{0}', space=sflag, size = 0x8, scoped, tag = 'scoped memory for tpu_custom_call.1']
    %9 = vsyncpa [#allocation5], 0
    %s10 = scalar_lea.sflag [#allocation5], 1
    %11 = vsyncpa %s10, 0
    loop: start=0, step=1, limit=4
    $region2: #{tpu_custom_call.1} parent=1 // loop_pre_header
      _
    $region3: #{tpu_custom_call.1} parent=1 // loop_header
      %s13 = sphi 0, %s17
      %p14 = scmp.ge.s32.totalorder %s13, 4
      %s20 = sphi 0, %s32
      %s21 = sphi 0, %s28
      %s22 = sphi 0, %s20
      %s23 = sphi 0, %s21
      %s24 = sphi 0, %s22
      %s25 = sphi 0, %s23
      %s37 = sphi 0, %s39
      %s40 = sphi 0, %s37
      %s41 = sphi 0, %s40
      %s57 = sphi 0, %s41
      %s61 = sphi 0, %s61
      %s63 = sphi 0, %s61
      %s64 = sphi 0, %s63
      %s78 = sphi 0, %s64
      %s82 = sphi 0, %s82
      %s84 = sphi 0, %s82
      %s85 = sphi 0, %s84
      %s99 = sphi 0, %s85
      %s103 = sphi 0, %s103
      %s105 = sphi 0, %s103
      %s106 = sphi 0, %s105
      %s120 = sphi 0, %s106
      %s126 = sphi 0, %s128
      %s129 = sphi 0, %s126
      %s130 = sphi 0, %s129
      %s146 = sphi 0, %s130
    $region4: #{tpu_custom_call.1} parent=1 // loop_header_branch
      %16 = sbr.rel (%p14) target = $region8
    $region5: #{tpu_custom_call.1} parent=1 // loop_body
      %s18 = ssub.s32 %s13, 1
      %s19 = ssub.s32 %s13, 2
      %s26 = sadd.s32 1, %s21
      %p27 = scmp.ge.s32.totalorder %s26, 1
      %s28 = scalar_select %p27, 0, %s26
      %s29 = sadd.s32 1, %s20
      %s30 = scalar_select %p27, %s29, %s20
      %p31 = scmp.ge.s32.totalorder %s30, 2
      %s32 = scalar_select %p31, 0, %s30
      %s33 = ssub.s32 %s20, %s32
      %s34 = ssub.s32 %s21, %s28
      %s35 = sor.u32 %s33, %s34
      %p36 = scmp.eq.s32.totalorder %s35, 0
      %s38 = sadd.s32 %s37, 1
      %s39 = scalar_select %p36, %s37, %s38
      %p42 = pneg %p36
      %p43 = scmp.eq.s32.totalorder %s13, 1
      %p44 = por %p42, %p43
      %p45 = scmp.ne.s32.totalorder %s37, %s40
      %p46 = scmp.eq.s32.totalorder %s13, 0
      %p47 = por %p45, %p46
      %p48 = scmp.ne.s32.totalorder %s37, %s40
      %p49 = scmp.eq.s32.totalorder %s18, 1
      %p50 = por %p48, %p49
      %p51 = scmp.ne.s32.totalorder %s40, %s41
      %p52 = scmp.eq.s32.totalorder %s18, 0
      %p53 = por %p51, %p52
      %p54 = scmp.ne.s32.totalorder %s40, %s41
      %p55 = scmp.eq.s32.totalorder %s19, 1
      %p56 = por %p54, %p55
      %p58 = scmp.ne.s32.totalorder %s41, %s57
      %p59 = scmp.eq.s32.totalorder %s19, 0
      %p60 = por %p58, %p59
      %s62 = sadd.s32 %s61, 1
      %p65 = scmp.eq.s32.totalorder %s13, 1
      %p66 = scmp.ne.s32.totalorder %s61, %s63
      %p67 = scmp.eq.s32.totalorder %s13, 0
      %p68 = por %p66, %p67
      %p69 = scmp.ne.s32.totalorder %s61, %s63
      %p70 = scmp.eq.s32.totalorder %s18, 1
      %p71 = por %p69, %p70
      %p72 = scmp.ne.s32.totalorder %s63, %s64
      %p73 = scmp.eq.s32.totalorder %s18, 0
      %p74 = por %p72, %p73
      %p75 = scmp.ne.s32.totalorder %s63, %s64
      %p76 = scmp.eq.s32.totalorder %s19, 1
      %p77 = por %p75, %p76
      %p79 = scmp.ne.s32.totalorder %s64, %s78
      %p80 = scmp.eq.s32.totalorder %s19, 0
      %p81 = por %p79, %p80
      %s83 = sadd.s32 %s82, 1
      %p86 = scmp.eq.s32.totalorder %s13, 1
      %p87 = scmp.ne.s32.totalorder %s82, %s84
      %p88 = scmp.eq.s32.totalorder %s13, 0
      %p89 = por %p87, %p88
      %p90 = scmp.ne.s32.totalorder %s82, %s84
      %p91 = scmp.eq.s32.totalorder %s18, 1
      %p92 = por %p90, %p91
      %p93 = scmp.ne.s32.totalorder %s84, %s85
      %p94 = scmp.eq.s32.totalorder %s18, 0
      %p95 = por %p93, %p94
      %p96 = scmp.ne.s32.totalorder %s84, %s85
      %p97 = scmp.eq.s32.totalorder %s19, 1
      %p98 = por %p96, %p97
      %p100 = scmp.ne.s32.totalorder %s85, %s99
      %p101 = scmp.eq.s32.totalorder %s19, 0
      %p102 = por %p100, %p101
      %s104 = sadd.s32 %s103, 1
      %p107 = scmp.eq.s32.totalorder %s13, 1
      %p108 = scmp.ne.s32.totalorder %s103, %s105
      %p109 = scmp.eq.s32.totalorder %s13, 0
      %p110 = por %p108, %p109
      %p111 = scmp.ne.s32.totalorder %s103, %s105
      %p112 = scmp.eq.s32.totalorder %s18, 1
      %p113 = por %p111, %p112
      %p114 = scmp.ne.s32.totalorder %s105, %s106
      %p115 = scmp.eq.s32.totalorder %s18, 0
      %p116 = por %p114, %p115
      %p117 = scmp.ne.s32.totalorder %s105, %s106
      %p118 = scmp.eq.s32.totalorder %s19, 1
      %p119 = por %p117, %p118
      %p121 = scmp.ne.s32.totalorder %s106, %s120
      %p122 = scmp.eq.s32.totalorder %s19, 0
      %p123 = por %p121, %p122
      %s124 = ssub.s32 %s20, %s32
      %p125 = scmp.eq.s32.totalorder %s124, 0
      %s127 = sadd.s32 %s126, 1
      %s128 = scalar_select %p125, %s126, %s127
      %p131 = pneg %p125
      %p132 = scmp.eq.s32.totalorder %s13, 1
      %p133 = por %p131, %p132
      %p134 = scmp.ne.s32.totalorder %s126, %s129
      %p135 = scmp.eq.s32.totalorder %s13, 0
      %p136 = por %p134, %p135
      %p137 = scmp.ne.s32.totalorder %s126, %s129
      %p138 = scmp.eq.s32.totalorder %s18, 1
      %p139 = por %p137, %p138
      %p140 = scmp.ne.s32.totalorder %s129, %s130
      %p141 = scmp.eq.s32.totalorder %s18, 0
      %p142 = por %p140, %p141
      %p143 = scmp.ne.s32.totalorder %s129, %s130
      %p144 = scmp.eq.s32.totalorder %s19, 1
      %p145 = por %p143, %p144
      %p147 = scmp.ne.s32.totalorder %s130, %s146
      %p148 = scmp.eq.s32.totalorder %s19, 0
      %p149 = por %p147, %p148
      %p150 = scmp.le.s32.totalorder 1, %s13
      %p151 = scmp.lt.s32.totalorder %s13, 3
      %p152 = pnand %p150, %p151
      %p153 = pneg %p152
      // Predicated region
      $region9: #{tpu_custom_call.1} parent=5 // pred_check
        _
      $region10: #{tpu_custom_call.1} parent=5 // pred_check_branch
        %155 = sbr.rel (%p152) target = $region12
      $region11: #{tpu_custom_call.1} parent=5 // pred_region
        %s156 = ssub.s32 %s13, 1
        // Predicated region
        $region13: #{tpu_custom_call.1} parent=11 // pred_check
          %p157 = pneg %p74
        $region14: #{tpu_custom_call.1} parent=11 // pred_check_branch
          %159 = sbr.rel (%p157) target = $region16
        $region15: #{tpu_custom_call.1} parent=11 // pred_region
          _
        $region16: #{tpu_custom_call.1} parent=11 // pred_fallthru
          _
        // Predicated region
        $region17: #{tpu_custom_call.1} parent=11 // pred_check
          %p160 = pneg %p95
        $region18: #{tpu_custom_call.1} parent=11 // pred_check_branch
          %162 = sbr.rel (%p160) target = $region20
        $region19: #{tpu_custom_call.1} parent=11 // pred_region
          _
        $region20: #{tpu_custom_call.1} parent=11 // pred_fallthru
          _
        // Predicated region
        $region21: #{tpu_custom_call.1} parent=11 // pred_check
          %p163 = pneg %p116
        $region22: #{tpu_custom_call.1} parent=11 // pred_check_branch
          %165 = sbr.rel (%p163) target = $region24
        $region23: #{tpu_custom_call.1} parent=11 // pred_region
          _
        $region24: #{tpu_custom_call.1} parent=11 // pred_fallthru
          _
      $region12: #{tpu_custom_call.1} parent=5 // pred_fallthru
        _
      %p166 = scmp.lt.s32.totalorder %s13, 2
      // Predicated region
      $region25: #{tpu_custom_call.1} parent=5 // pred_check
        %p167 = pneg %p166
      $region26: #{tpu_custom_call.1} parent=5 // pred_check_branch
        %169 = sbr.rel (%p167) target = $region28
      $region27: #{tpu_custom_call.1} parent=5 // pred_region
        // Predicated region
        $region29: #{tpu_custom_call.1} parent=27 // pred_check
          %p170 = pneg %p47
        $region30: #{tpu_custom_call.1} parent=27 // pred_check_branch
          %172 = sbr.rel (%p170) target = $region32
        $region31: #{tpu_custom_call.1} parent=27 // pred_region
          %p173 = scmp.lt.s32.totalorder %s20, 1
          %s174 = scalar_select %p173, %s20, 1
          %p175 = scmp.lt.s32.totalorder %s21, 0
          %s176 = scalar_select %p175, %s21, 0
          %s177 = smul.addr %s174, 16
          %s178 = sadd.s32 %s176, %s177
          %s179 = smul.addr %s178, 8
          %s180 = scalar_lea.vmem %s0, %s179
        $region32: #{tpu_custom_call.1} parent=27 // pred_fallthru
          _
      $region28: #{tpu_custom_call.1} parent=5 // pred_fallthru
        _
      %p181 = scmp.le.s32.totalorder 1, %s13
      %p182 = scmp.lt.s32.totalorder %s13, 3
      %p183 = pnand %p181, %p182
      %p184 = pneg %p183
      // Predicated region
      $region33: #{tpu_custom_call.1} parent=5 // pred_check
        _
      $region34: #{tpu_custom_call.1} parent=5 // pred_check_branch
        %186 = sbr.rel (%p183) target = $region36
      $region35: #{tpu_custom_call.1} parent=5 // pred_region
        %s187 = ssub.s32 %s13, 1
        %p188 = scmp.lt.s32.totalorder %s22, 1
        %s189 = scalar_select %p188, %s22, 1
        %p190 = scmp.lt.s32.totalorder %s23, 0
        %s191 = scalar_select %p190, %s23, 0
        %s192 = smul.addr %s189, 16
        %s193 = sadd.s32 %s191, %s192
        %s194 = smul.addr %s193, 8
        %s195 = scalar_lea.vmem %s0, %s194
        %p196 = pneg %p53
        %p197 = pneg %p50
        %p198 = pneg %p74
        %p199 = pneg %p71
        %p200 = pneg %p95
        %p201 = pneg %p92
        %p202 = pneg %p116
        %p203 = pneg %p113
        %p204 = pneg %p142
        %p205 = pneg %p139
        %s206 = sand.u32 %s129, 1
        %s207 = scalar_lea.sflag [#allocation5], %s206
        %s208 = sand.u32 %s129, 1
        %s209 = smul.addr %s208, 32
        %s210 = scalar_lea.vmem [#allocation4], %s209
        %p211 = scmp.lt.s32.totalorder %s22, 1
        %s212 = scalar_select %p211, %s22, 1
        %p213 = scmp.lt.s32.totalorder %s23, 0
        %s214 = scalar_select %p213, %s23, 0
        %s215 = smul.addr %s212, 16
        %s216 = sadd.s32 %s214, %s215
        %s217 = smul.addr %s216, 8
        %s218 = scalar_lea.vmem %s0, %s217
        %p219 = scmp.eq.s32.totalorder %s23, 0
        // Predicated region
        $region37: #{tpu_custom_call.1} parent=35 // pred_check
          %p220 = pneg %p219
        $region38: #{tpu_custom_call.1} parent=35 // pred_check_branch
          %222 = sbr.rel (%p220) target = $region40
        $region39: #{tpu_custom_call.1} parent=35 // pred_region
          %223 = vst [vmem:[#allocation2] sm:$0xff] 0.0
          %224 = vst [vmem:[#allocation2 + $0x8] sm:$0xff] 0.0
          %225 = vst [vmem:[#allocation2 + $0x10] sm:$0xff] 0.0
          %226 = vst [vmem:[#allocation2 + $0x18] sm:$0xff] 0.0
          %227 = vst [vmem:[#allocation2 + $0x20] sm:$0xff] 0.0
          %228 = vst [vmem:[#allocation2 + $0x28] sm:$0xff] 0.0
          %229 = vst [vmem:[#allocation2 + $0x30] sm:$0xff] 0.0
          %230 = vst [vmem:[#allocation2 + $0x38] sm:$0xff] 0.0
          %231 = vst [vmem:[#allocation2 + $0x40] sm:$0xff] 0.0
          %232 = vst [vmem:[#allocation2 + $0x48] sm:$0xff] 0.0
          %233 = vst [vmem:[#allocation2 + $0x50] sm:$0xff] 0.0
          %234 = vst [vmem:[#allocation2 + $0x58] sm:$0xff] 0.0
          %235 = vst [vmem:[#allocation2 + $0x60] sm:$0xff] 0.0
          %236 = vst [vmem:[#allocation2 + $0x68] sm:$0xff] 0.0
          %237 = vst [vmem:[#allocation2 + $0x70] sm:$0xff] 0.0
          %238 = vst [vmem:[#allocation2 + $0x78] sm:$0xff] 0.0
          %vm239 = vcmask 7168
          %240 = vst.msk [vmem:[#allocation3] sm:$0xff] %vm239, 0.0
          %241 = vst.msk [vmem:[#allocation3 + $0x8] sm:$0xff] %vm239, 0.0
          %242 = vst.msk [vmem:[#allocation3 + $0x10] sm:$0xff] %vm239, 0.0
          %243 = vst.msk [vmem:[#allocation3 + $0x18] sm:$0xff] %vm239, 0.0
          %244 = vst.msk [vmem:[#allocation3 + $0x20] sm:$0xff] %vm239, 0.0
          %245 = vst.msk [vmem:[#allocation3 + $0x28] sm:$0xff] %vm239, 0.0
          %246 = vst.msk [vmem:[#allocation3 + $0x30] sm:$0xff] %vm239, 0.0
          %247 = vst.msk [vmem:[#allocation3 + $0x38] sm:$0xff] %vm239, 0.0
          %248 = vst.msk [vmem:[#allocation3 + $0x40] sm:$0xff] %vm239, 0.0
          %249 = vst.msk [vmem:[#allocation3 + $0x48] sm:$0xff] %vm239, 0.0
          %250 = vst.msk [vmem:[#allocation3 + $0x50] sm:$0xff] %vm239, 0.0
          %251 = vst.msk [vmem:[#allocation3 + $0x58] sm:$0xff] %vm239, 0.0
          %252 = vst.msk [vmem:[#allocation3 + $0x60] sm:$0xff] %vm239, 0.0
          %253 = vst.msk [vmem:[#allocation3 + $0x68] sm:$0xff] %vm239, 0.0
          %254 = vst.msk [vmem:[#allocation3 + $0x70] sm:$0xff] %vm239, 0.0
          %255 = vst.msk [vmem:[#allocation3 + $0x78] sm:$0xff] %vm239, 0.0
        $region40: #{tpu_custom_call.1} parent=35 // pred_fallthru
          _
        %v256 = vld [vmem:[%s218] sm:$0xff]
        %v257 = vld [vmem:[%s218 + $0x8] sm:$0xff]
        %v258 = vld [vmem:[%s218 + $0x10] sm:$0xff]
        %v259 = vld [vmem:[%s218 + $0x18] sm:$0xff]
        %v260 = vld [vmem:[%s218 + $0x20] sm:$0xff]
        %v261 = vld [vmem:[%s218 + $0x28] sm:$0xff]
        %v262 = vld [vmem:[%s218 + $0x30] sm:$0xff]
        %v263 = vld [vmem:[%s218 + $0x38] sm:$0xff]
        %v264 = vld [vmem:[%s218 + $0x40] sm:$0xff]
        %v265 = vld [vmem:[%s218 + $0x48] sm:$0xff]
        %v266 = vld [vmem:[%s218 + $0x50] sm:$0xff]
        %v267 = vld [vmem:[%s218 + $0x58] sm:$0xff]
        %v268 = vld [vmem:[%s218 + $0x60] sm:$0xff]
        %v269 = vld [vmem:[%s218 + $0x68] sm:$0xff]
        %v270 = vld [vmem:[%s218 + $0x70] sm:$0xff]
        %v271 = vld [vmem:[%s218 + $0x78] sm:$0xff]
        %v272 = vmul.f32 %v256, %v256
        %v273 = vmul.f32 %v257, %v257
        %v274 = vmul.f32 %v258, %v258
        %v275 = vmul.f32 %v259, %v259
        %v276 = vmul.f32 %v260, %v260
        %v277 = vmul.f32 %v261, %v261
        %v278 = vmul.f32 %v262, %v262
        %v279 = vmul.f32 %v263, %v263
        %v280 = vmul.f32 %v264, %v264
        %v281 = vmul.f32 %v265, %v265
        %v282 = vmul.f32 %v266, %v266
        %v283 = vmul.f32 %v267, %v267
        %v284 = vmul.f32 %v268, %v268
        %v285 = vmul.f32 %v269, %v269
        %v286 = vmul.f32 %v270, %v270
        %v287 = vmul.f32 %v271, %v271
        %vm288 = vcmask 523264
        %v289 = vsel %vm288, %v272, 0.0
        %v290 = vsel %vm288, %v273, 0.0
        %v291 = vadd.f32 %v289, %v290
        %v292 = vsel %vm288, %v274, 0.0
        %v293 = vadd.f32 %v291, %v292
        %v294 = vsel %vm288, %v275, 0.0
        %v295 = vadd.f32 %v293, %v294
        %v296 = vsel %vm288, %v276, 0.0
        %v297 = vadd.f32 %v295, %v296
        %v298 = vsel %vm288, %v277, 0.0
        %v299 = vadd.f32 %v297, %v298
        %v300 = vsel %vm288, %v278, 0.0
        %v301 = vadd.f32 %v299, %v300
        %v302 = vsel %vm288, %v279, 0.0
        %v303 = vadd.f32 %v301, %v302
        %v304 = vsel %vm288, %v280, 0.0
        %v305 = vadd.f32 %v303, %v304
        %v306 = vsel %vm288, %v281, 0.0
        %v307 = vadd.f32 %v305, %v306
        %v308 = vsel %vm288, %v282, 0.0
        %v309 = vadd.f32 %v307, %v308
        %v310 = vsel %vm288, %v283, 0.0
        %v311 = vadd.f32 %v309, %v310
        %v312 = vsel %vm288, %v284, 0.0
        %v313 = vadd.f32 %v311, %v312
        %v314 = vsel %vm288, %v285, 0.0
        %v315 = vadd.f32 %v313, %v314
        %v316 = vsel %vm288, %v286, 0.0
        %v317 = vadd.f32 %v315, %v316
        %v318 = vsel %vm288, %v287, 0.0
        %v319 = vadd.f32 %v317, %v318
        %v320 = vrot.slane %v319, 4
        %v321 = vadd.f32 %v319, %v320
        %v322 = vrot.slane %v321, 2
        %v323 = vadd.f32 %v321, %v322
        %v324 = vrot.slane %v323, 1
        %v325 = vadd.f32 %v323, %v324
        %v326 = vmax.f32 %v325, 1e-24
        %v327 = vrsqrt.pop %v326
        %v328 = vmul.f32 %v256, %v327
        %v329 = vmul.f32 %v257, %v327
        %v330 = vmul.f32 %v258, %v327
        %v331 = vmul.f32 %v259, %v327
        %v332 = vmul.f32 %v260, %v327
        %v333 = vmul.f32 %v261, %v327
        %v334 = vmul.f32 %v262, %v327
        %v335 = vmul.f32 %v263, %v327
        %v336 = vmul.f32 %v264, %v327
        %v337 = vmul.f32 %v265, %v327
        %v338 = vmul.f32 %v266, %v327
        %v339 = vmul.f32 %v267, %v327
        %v340 = vmul.f32 %v268, %v327
        %v341 = vmul.f32 %v269, %v327
        %v342 = vmul.f32 %v270, %v327
        %v343 = vmul.f32 %v271, %v327
        %v344 = vld [vmem:[%s1] sm:$0xff]
        %v345 = vld [vmem:[%s1 + $0x8] sm:$0xff]
        %v346 = vld [vmem:[%s1 + $0x10] sm:$0xff]
        %v347 = vld [vmem:[%s1 + $0x18] sm:$0xff]
        %v348 = vld [vmem:[%s1 + $0x20] sm:$0xff]
        %v349 = vld [vmem:[%s1 + $0x28] sm:$0xff]
        %v350 = vld [vmem:[%s1 + $0x30] sm:$0xff]
        %v351 = vld [vmem:[%s1 + $0x38] sm:$0xff]
        %v352 = vld [vmem:[%s1 + $0x40] sm:$0xff]
        %v353 = vld [vmem:[%s1 + $0x48] sm:$0xff]
        %v354 = vld [vmem:[%s1 + $0x50] sm:$0xff]
        %v355 = vld [vmem:[%s1 + $0x58] sm:$0xff]
        %v356 = vld [vmem:[%s1 + $0x60] sm:$0xff]
        %v357 = vld [vmem:[%s1 + $0x68] sm:$0xff]
        %v358 = vld [vmem:[%s1 + $0x70] sm:$0xff]
        %v359 = vld [vmem:[%s1 + $0x78] sm:$0xff]
        %v360 = vld [vmem:[%s2] sm:$0xff]
        %v361 = vld [vmem:[%s2 + $0x8] sm:$0xff]
        %v362 = vld [vmem:[%s2 + $0x10] sm:$0xff]
        %v363 = vld [vmem:[%s2 + $0x18] sm:$0xff]
        %v364 = vld [vmem:[%s2 + $0x20] sm:$0xff]
        %v365 = vld [vmem:[%s2 + $0x28] sm:$0xff]
        %v366 = vld [vmem:[%s2 + $0x30] sm:$0xff]
        %v367 = vld [vmem:[%s2 + $0x38] sm:$0xff]
        %v368 = vld [vmem:[%s2 + $0x40] sm:$0xff]
        %v369 = vld [vmem:[%s2 + $0x48] sm:$0xff]
        %v370 = vld [vmem:[%s2 + $0x50] sm:$0xff]
        %v371 = vld [vmem:[%s2 + $0x58] sm:$0xff]
        %v372 = vld [vmem:[%s2 + $0x60] sm:$0xff]
        %v373 = vld [vmem:[%s2 + $0x68] sm:$0xff]
        %v374 = vld [vmem:[%s2 + $0x70] sm:$0xff]
        %v375 = vld [vmem:[%s2 + $0x78] sm:$0xff]
        %377 = vset.pattern.permute.xlu0 0
        %378 = vperm.xlu0 %377, %v360
        %v379 = vpop.permute.xlu0 %378
        %382 = vset.pattern.permute.xlu0 0
        %383 = vperm.xlu0 %382, %v361
        %v384 = vpop.permute.xlu0 %383
        %387 = vset.pattern.permute.xlu0 0
        %388 = vperm.xlu0 %387, %v362
        %v389 = vpop.permute.xlu0 %388
        %392 = vset.pattern.permute.xlu0 0
        %393 = vperm.xlu0 %392, %v363
        %v394 = vpop.permute.xlu0 %393
        %397 = vset.pattern.permute.xlu0 0
        %398 = vperm.xlu0 %397, %v364
        %v399 = vpop.permute.xlu0 %398
        %402 = vset.pattern.permute.xlu0 0
        %403 = vperm.xlu0 %402, %v365
        %v404 = vpop.permute.xlu0 %403
        %407 = vset.pattern.permute.xlu0 0
        %408 = vperm.xlu0 %407, %v366
        %v409 = vpop.permute.xlu0 %408
        %412 = vset.pattern.permute.xlu0 0
        %413 = vperm.xlu0 %412, %v367
        %v414 = vpop.permute.xlu0 %413
        %417 = vset.pattern.permute.xlu0 0
        %418 = vperm.xlu0 %417, %v368
        %v419 = vpop.permute.xlu0 %418
        %422 = vset.pattern.permute.xlu0 0
        %423 = vperm.xlu0 %422, %v369
        %v424 = vpop.permute.xlu0 %423
        %427 = vset.pattern.permute.xlu0 0
        %428 = vperm.xlu0 %427, %v370
        %v429 = vpop.permute.xlu0 %428
        %432 = vset.pattern.permute.xlu0 0
        %433 = vperm.xlu0 %432, %v371
        %v434 = vpop.permute.xlu0 %433
        %437 = vset.pattern.permute.xlu0 0
        %438 = vperm.xlu0 %437, %v372
        %v439 = vpop.permute.xlu0 %438
        %442 = vset.pattern.permute.xlu0 0
        %443 = vperm.xlu0 %442, %v373
        %v444 = vpop.permute.xlu0 %443
        %447 = vset.pattern.permute.xlu0 0
        %448 = vperm.xlu0 %447, %v374
        %v449 = vpop.permute.xlu0 %448
        %452 = vset.pattern.permute.xlu0 0
        %453 = vperm.xlu0 %452, %v375
        %v454 = vpop.permute.xlu0 %453
        %456 = vmatprep.subr.mxu0 0.0
        %457 = vmatpush1.msra.mxu0 %v328
        %458 = vmatprep.subr.mxu0 0.0
        %459 = vmatpush1.msra.mxu0 %v329
        %460 = vmatprep.subr.mxu0 0.0
        %461 = vmatpush1.msra.mxu0 %v330
        %462 = vmatprep.subr.mxu0 0.0
        %463 = vmatpush1.msra.mxu0 %v331
        %464 = vmatprep.subr.mxu0 0.0
        %465 = vmatpush1.msra.mxu0 %v332
        %466 = vmatprep.subr.mxu0 0.0
        %467 = vmatpush1.msra.mxu0 %v333
        %468 = vmatprep.subr.mxu0 0.0
        %469 = vmatpush1.msra.mxu0 %v334
        %470 = vmatprep.subr.mxu0 0.0
        %471 = vmatpush1.msra.mxu0 %v335
        %472 = vmatprep.subr.mxu0 0.0
        %473 = vmatpush1.msra.mxu0 %v336
        %474 = vmatprep.subr.mxu0 0.0
        %475 = vmatpush1.msra.mxu0 %v337
        %476 = vmatprep.subr.mxu0 0.0
        %477 = vmatpush1.msra.mxu0 %v338
        %478 = vmatprep.subr.mxu0 0.0
        %479 = vmatpush1.msra.mxu0 %v339
        %480 = vmatprep.subr.mxu0 0.0
        %481 = vmatpush1.msra.mxu0 %v340
        %482 = vmatprep.subr.mxu0 0.0
        %483 = vmatpush1.msra.mxu0 %v341
        %484 = vmatprep.subr.mxu0 0.0
        %485 = vmatpush1.msra.mxu0 %v342
        %486 = vmatprep.subr.mxu0 0.0
        %487 = vmatpush1.msra.mxu0 %v343
        %488 = vmatprep.subr.mxu0 0.0
        %489 = vmatpush1.msra.mxu0 0.0
        %490 = vmatprep.subr.mxu0 0.0
        %491 = vmatpush1.msra.mxu0 0.0
        %492 = vmatprep.subr.mxu0 0.0
        %493 = vmatpush1.msra.mxu0 0.0
        %494 = vmatprep.subr.mxu0 0.0
        %495 = vmatpush1.msra.mxu0 0.0
        %496 = vmatprep.subr.mxu0 0.0
        %497 = vmatpush1.msra.mxu0 0.0
        %498 = vmatprep.subr.mxu0 0.0
        %499 = vmatpush1.msra.mxu0 0.0
        %500 = vmatprep.subr.mxu0 0.0
        %501 = vmatpush1.msra.mxu0 0.0
        %502 = vmatprep.subr.mxu0 0.0
        %503 = vmatpush1.msra.mxu0 0.0
        %504 = vmatprep.subr.mxu0 0.0
        %505 = vmatpush1.msra.mxu0 0.0
        %506 = vmatprep.subr.mxu0 0.0
        %507 = vmatpush1.msra.mxu0 0.0
        %508 = vmatprep.subr.mxu0 0.0
        %509 = vmatpush1.msra.mxu0 0.0
        %510 = vmatprep.subr.mxu0 0.0
        %511 = vmatpush1.msra.mxu0 0.0
        %512 = vmatprep.subr.mxu0 0.0
        %513 = vmatpush1.msra.mxu0 0.0
        %514 = vmatprep.subr.mxu0 0.0
        %515 = vmatpush1.msra.mxu0 0.0
        %516 = vmatprep.subr.mxu0 0.0
        %517 = vmatpush1.msra.mxu0 0.0
        %518 = vmatprep.subr.mxu0 0.0
        %519 = vmatpush1.msra.mxu0 0.0
        %520 = vmatprep.mubr.f32.mxu0 0.0
        %521 = vmatmul.mubr.f32.gmra.mrb[0].mxu0 %v344
        %v522 = vpop.f32.mrb[0].mxu0
        %v523 = vadd.f32 %v379, %v522
        %v524 = vpop.f32.mrb[0].mxu0
        %525 = vmatprep.mubr.f32.mxu0 0.0
        %526 = vmatmul.mubr.f32.gmra.mrb[0].mxu0 %v345
        %v527 = vpop.f32.mrb[0].mxu0
        %v528 = vadd.f32 %v384, %v527
        %v529 = vpop.f32.mrb[0].mxu0
        %530 = vmatprep.mubr.f32.mxu0 0.0
        %531 = vmatmul.mubr.f32.gmra.mrb[0].mxu0 %v346
        %v532 = vpop.f32.mrb[0].mxu0
        %v533 = vadd.f32 %v389, %v532
        %v534 = vpop.f32.mrb[0].mxu0
        %535 = vmatprep.mubr.f32.mxu0 0.0
        %536 = vmatmul.mubr.f32.gmra.mrb[0].mxu0 %v347
        %v537 = vpop.f32.mrb[0].mxu0
        %v538 = vadd.f32 %v394, %v537
        %v539 = vpop.f32.mrb[0].mxu0
        %540 = vmatprep.mubr.f32.mxu0 0.0
        %541 = vmatmul.mubr.f32.gmra.mrb[0].mxu0 %v348
        %v542 = vpop.f32.mrb[0].mxu0
        %v543 = vadd.f32 %v399, %v542
        %v544 = vpop.f32.mrb[0].mxu0
        %545 = vmatprep.mubr.f32.mxu0 0.0
        %546 = vmatmul.mubr.f32.gmra.mrb[0].mxu0 %v349
        %v547 = vpop.f32.mrb[0].mxu0
        %v548 = vadd.f32 %v404, %v547
        %v549 = vpop.f32.mrb[0].mxu0
        %550 = vmatprep.mubr.f32.mxu0 0.0
        %551 = vmatmul.mubr.f32.gmra.mrb[0].mxu0 %v350
        %v552 = vpop.f32.mrb[0].mxu0
        %v553 = vadd.f32 %v409, %v552
        %v554 = vpop.f32.mrb[0].mxu0
        %555 = vmatprep.mubr.f32.mxu0 0.0
        %556 = vmatmul.mubr.f32.gmra.mrb[0].mxu0 %v351
        %v557 = vpop.f32.mrb[0].mxu0
        %v558 = vadd.f32 %v414, %v557
        %v559 = vpop.f32.mrb[0].mxu0
        %560 = vmatprep.mubr.f32.mxu0 0.0
        %561 = vmatmul.mubr.f32.gmra.mrb[0].mxu0 %v352
        %v562 = vpop.f32.mrb[0].mxu0
        %v563 = vadd.f32 %v419, %v562
        %v564 = vpop.f32.mrb[0].mxu0
        %565 = vmatprep.mubr.f32.mxu0 0.0
        %566 = vmatmul.mubr.f32.gmra.mrb[0].mxu0 %v353
        %v567 = vpop.f32.mrb[0].mxu0
        %v568 = vadd.f32 %v424, %v567
        %v569 = vpop.f32.mrb[0].mxu0
        %570 = vmatprep.mubr.f32.mxu0 0.0
        %571 = vmatmul.mubr.f32.gmra.mrb[0].mxu0 %v354
        %v572 = vpop.f32.mrb[0].mxu0
        %v573 = vadd.f32 %v429, %v572
        %v574 = vpop.f32.mrb[0].mxu0
        %575 = vmatprep.mubr.f32.mxu0 0.0
        %576 = vmatmul.mubr.f32.gmra.mrb[0].mxu0 %v355
        %v577 = vpop.f32.mrb[0].mxu0
        %v578 = vadd.f32 %v434, %v577
        %v579 = vpop.f32.mrb[0].mxu0
        %580 = vmatprep.mubr.f32.mxu0 0.0
        %581 = vmatmul.mubr.f32.gmra.mrb[0].mxu0 %v356
        %v582 = vpop.f32.mrb[0].mxu0
        %v583 = vadd.f32 %v439, %v582
        %v584 = vpop.f32.mrb[0].mxu0
        %585 = vmatprep.mubr.f32.mxu0 0.0
        %586 = vmatmul.mubr.f32.gmra.mrb[0].mxu0 %v357
        %v587 = vpop.f32.mrb[0].mxu0
        %v588 = vadd.f32 %v444, %v587
        %v589 = vpop.f32.mrb[0].mxu0
        %590 = vmatprep.mubr.f32.mxu0 0.0
        %591 = vmatmul.mubr.f32.gmra.mrb[0].mxu0 %v358
        %v592 = vpop.f32.mrb[0].mxu0
        %v593 = vadd.f32 %v449, %v592
        %v594 = vpop.f32.mrb[0].mxu0
        %595 = vmatprep.mubr.f32.mxu0 0.0
        %596 = vmatmul.mubr.f32.gmra.mrb[0].mxu0 %v359
        %v597 = vpop.f32.mrb[0].mxu0
        %v598 = vadd.f32 %v454, %v597
        %v599 = vpop.f32.mrb[0].mxu0
        %600 = vdwg.mxu0
        %v601 = vsel %vm288, %v523, -inf
        %v602 = vsel %vm288, %v528, -inf
        %v603 = vsel %vm288, %v533, -inf
        %v604 = vsel %vm288, %v538, -inf
        %v605 = vsel %vm288, %v543, -inf
        %v606 = vmax.f32 %v601, %v605
        %v607 = vsel %vm288, %v548, -inf
        %v608 = vmax.f32 %v602, %v607
        %v609 = vsel %vm288, %v553, -inf
        %v610 = vmax.f32 %v603, %v609
        %v611 = vsel %vm288, %v558, -inf
        %v612 = vmax.f32 %v604, %v611
        %v613 = vsel %vm288, %v563, -inf
        %v614 = vmax.f32 %v606, %v613
        %v615 = vsel %vm288, %v568, -inf
        %v616 = vmax.f32 %v608, %v615
        %v617 = vsel %vm288, %v573, -inf
        %v618 = vmax.f32 %v610, %v617
        %v619 = vsel %vm288, %v578, -inf
        %v620 = vmax.f32 %v612, %v619
        %v621 = vsel %vm288, %v583, -inf
        %v622 = vmax.f32 %v614, %v621
        %v623 = vsel %vm288, %v588, -inf
        %v624 = vmax.f32 %v616, %v623
        %v625 = vsel %vm288, %v593, -inf
        %v626 = vmax.f32 %v618, %v625
        %v627 = vsel %vm288, %v598, -inf
        %v628 = vmax.f32 %v620, %v627
        %v629 = vmax.f32 %v622, %v624
        %v630 = vmax.f32 %v626, %v628
        %v631 = vmax.f32 %v629, %v630
        %v632 = vrot.slane %v631, 4
        %v633 = vmax.f32 %v631, %v632
        %v634 = vrot.slane %v633, 2
        %v635 = vmax.f32 %v633, %v634
        %v636 = vrot.slane %v635, 1
        %v637 = vmax.f32 %v635, %v636
        %v638 = vsub.f32 %v523, %v637
        %v639 = vsub.f32 %v528, %v637
        %v640 = vsub.f32 %v533, %v637
        %v641 = vsub.f32 %v538, %v637
        %v642 = vsub.f32 %v543, %v637
        %v643 = vsub.f32 %v548, %v637
        %v644 = vsub.f32 %v553, %v637
        %v645 = vsub.f32 %v558, %v637
        %v646 = vsub.f32 %v563, %v637
        %v647 = vsub.f32 %v568, %v637
        %v648 = vsub.f32 %v573, %v637
        %v649 = vsub.f32 %v578, %v637
        %v650 = vsub.f32 %v583, %v637
        %v651 = vsub.f32 %v588, %v637
        %v652 = vsub.f32 %v593, %v637
        %v653 = vsub.f32 %v598, %v637
        %v654 = vmul.f32 %v638, 1.442695
        %v655 = vpow.pop %v654
        %v656 = vmul.f32 %v639, 1.442695
        %v657 = vpow.pop %v656
        %v658 = vmul.f32 %v640, 1.442695
        %v659 = vpow.pop %v658
        %v660 = vmul.f32 %v641, 1.442695
        %v661 = vpow.pop %v660
        %v662 = vmul.f32 %v642, 1.442695
        %v663 = vpow.pop %v662
        %v664 = vmul.f32 %v643, 1.442695
        %v665 = vpow.pop %v664
        %v666 = vmul.f32 %v644, 1.442695
        %v667 = vpow.pop %v666
        %v668 = vmul.f32 %v645, 1.442695
        %v669 = vpow.pop %v668
        %v670 = vmul.f32 %v646, 1.442695
        %v671 = vpow.pop %v670
        %v672 = vmul.f32 %v647, 1.442695
        %v673 = vpow.pop %v672
        %v674 = vmul.f32 %v648, 1.442695
        %v675 = vpow.pop %v674
        %v676 = vmul.f32 %v649, 1.442695
        %v677 = vpow.pop %v676
        %v678 = vmul.f32 %v650, 1.442695
        %v679 = vpow.pop %v678
        %v680 = vmul.f32 %v651, 1.442695
        %v681 = vpow.pop %v680
        %v682 = vmul.f32 %v652, 1.442695
        %v683 = vpow.pop %v682
        %v684 = vmul.f32 %v653, 1.442695
        %v685 = vpow.pop %v684
        %v686 = vsel %vm288, %v655, 0.0
        %v687 = vsel %vm288, %v657, 0.0
        %v688 = vadd.f32 %v686, %v687
        %v689 = vsel %vm288, %v659, 0.0
        %v690 = vadd.f32 %v688, %v689
        %v691 = vsel %vm288, %v661, 0.0
        %v692 = vadd.f32 %v690, %v691
        %v693 = vsel %vm288, %v663, 0.0
        %v694 = vadd.f32 %v692, %v693
        %v695 = vsel %vm288, %v665, 0.0
        %v696 = vadd.f32 %v694, %v695
        %v697 = vsel %vm288, %v667, 0.0
        %v698 = vadd.f32 %v696, %v697
        %v699 = vsel %vm288, %v669, 0.0
        %v700 = vadd.f32 %v698, %v699
        %v701 = vsel %vm288, %v671, 0.0
        %v702 = vadd.f32 %v700, %v701
        %v703 = vsel %vm288, %v673, 0.0
        %v704 = vadd.f32 %v702, %v703
        %v705 = vsel %vm288, %v675, 0.0
        %v706 = vadd.f32 %v704, %v705
        %v707 = vsel %vm288, %v677, 0.0
        %v708 = vadd.f32 %v706, %v707
        %v709 = vsel %vm288, %v679, 0.0
        %v710 = vadd.f32 %v708, %v709
        %v711 = vsel %vm288, %v681, 0.0
        %v712 = vadd.f32 %v710, %v711
        %v713 = vsel %vm288, %v683, 0.0
        %v714 = vadd.f32 %v712, %v713
        %v715 = vsel %vm288, %v685, 0.0
        %v716 = vadd.f32 %v714, %v715
        %v717 = vrot.slane %v716, 4
        %v718 = vadd.f32 %v716, %v717
        %v719 = vrot.slane %v718, 2
        %v720 = vadd.f32 %v718, %v719
        %v721 = vrot.slane %v720, 1
        %v722 = vadd.f32 %v720, %v721
        %v723 = vrcp.pop %v722
        %v724 = vmul.f32 %v655, %v723
        %v725 = vmul.f32 %v657, %v723
        %v726 = vmul.f32 %v659, %v723
        %v727 = vmul.f32 %v661, %v723
        %v728 = vmul.f32 %v663, %v723
        %v729 = vmul.f32 %v665, %v723
        %v730 = vmul.f32 %v667, %v723
        %v731 = vmul.f32 %v669, %v723
        %v732 = vmul.f32 %v671, %v723
        %v733 = vmul.f32 %v673, %v723
        %v734 = vmul.f32 %v675, %v723
        %v735 = vmul.f32 %v677, %v723
        %v736 = vmul.f32 %v679, %v723
        %v737 = vmul.f32 %v681, %v723
        %v738 = vmul.f32 %v683, %v723
        %v739 = vmul.f32 %v685, %v723
        %v740 = vld [vmem:[#allocation2] sm:$0xff]
        %v741 = vld [vmem:[#allocation2 + $0x8] sm:$0xff]
        %v742 = vld [vmem:[#allocation2 + $0x10] sm:$0xff]
        %v743 = vld [vmem:[#allocation2 + $0x18] sm:$0xff]
        %v744 = vld [vmem:[#allocation2 + $0x20] sm:$0xff]
        %v745 = vld [vmem:[#allocation2 + $0x28] sm:$0xff]
        %v746 = vld [vmem:[#allocation2 + $0x30] sm:$0xff]
        %v747 = vld [vmem:[#allocation2 + $0x38] sm:$0xff]
        %v748 = vld [vmem:[#allocation2 + $0x40] sm:$0xff]
        %v749 = vld [vmem:[#allocation2 + $0x48] sm:$0xff]
        %v750 = vld [vmem:[#allocation2 + $0x50] sm:$0xff]
        %v751 = vld [vmem:[#allocation2 + $0x58] sm:$0xff]
        %v752 = vld [vmem:[#allocation2 + $0x60] sm:$0xff]
        %v753 = vld [vmem:[#allocation2 + $0x68] sm:$0xff]
        %v754 = vld [vmem:[#allocation2 + $0x70] sm:$0xff]
        %v755 = vld [vmem:[#allocation2 + $0x78] sm:$0xff]
        %v757 = vsel %vm288, %v724, 0
        %v760 = vsel %vm288, %v725, 0
        %v763 = vsel %vm288, %v726, 0
        %v766 = vsel %vm288, %v727, 0
        %v769 = vsel %vm288, %v728, 0
        %v772 = vsel %vm288, %v729, 0
        %v775 = vsel %vm288, %v730, 0
        %v778 = vsel %vm288, %v731, 0
        %v781 = vsel %vm288, %v732, 0
        %v784 = vsel %vm288, %v733, 0
        %v787 = vsel %vm288, %v734, 0
        %v790 = vsel %vm288, %v735, 0
        %v793 = vsel %vm288, %v736, 0
        %v796 = vsel %vm288, %v737, 0
        %v799 = vsel %vm288, %v738, 0
        %v802 = vsel %vm288, %v739, 0
        %v805 = vsel %vm288, %v328, 0
        %v808 = vsel %vm288, %v329, 0
        %v811 = vsel %vm288, %v330, 0
        %v814 = vsel %vm288, %v331, 0
        %v817 = vsel %vm288, %v332, 0
        %v820 = vsel %vm288, %v333, 0
        %v823 = vsel %vm288, %v334, 0
        %v826 = vsel %vm288, %v335, 0
        %v829 = vsel %vm288, %v336, 0
        %v832 = vsel %vm288, %v337, 0
        %v835 = vsel %vm288, %v338, 0
        %v838 = vsel %vm288, %v339, 0
        %v841 = vsel %vm288, %v340, 0
        %v844 = vsel %vm288, %v341, 0
        %v847 = vsel %vm288, %v342, 0
        %v850 = vsel %vm288, %v343, 0
        %852 = vmatprep.subr.mxu0 0.0
        %853 = vmatpush1.xpose.msra.mxu0 %v805
        %854 = vmatprep.subr.mxu0 0.0
        %855 = vmatpush1.xpose.msra.mxu0 %v808
        %856 = vmatprep.subr.mxu0 0.0
        %857 = vmatpush1.xpose.msra.mxu0 %v811
        %858 = vmatprep.subr.mxu0 0.0
        %859 = vmatpush1.xpose.msra.mxu0 %v814
        %860 = vmatprep.subr.mxu0 0.0
        %861 = vmatpush1.xpose.msra.mxu0 %v817
        %862 = vmatprep.subr.mxu0 0.0
        %863 = vmatpush1.xpose.msra.mxu0 %v820
        %864 = vmatprep.subr.mxu0 0.0
        %865 = vmatpush1.xpose.msra.mxu0 %v823
        %866 = vmatprep.subr.mxu0 0.0
        %867 = vmatpush1.xpose.msra.mxu0 %v826
        %868 = vmatprep.subr.mxu0 0.0
        %869 = vmatpush1.xpose.msra.mxu0 %v829
        %870 = vmatprep.subr.mxu0 0.0
        %871 = vmatpush1.xpose.msra.mxu0 %v832
        %872 = vmatprep.subr.mxu0 0.0
        %873 = vmatpush1.xpose.msra.mxu0 %v835
        %874 = vmatprep.subr.mxu0 0.0
        %875 = vmatpush1.xpose.msra.mxu0 %v838
        %876 = vmatprep.subr.mxu0 0.0
        %877 = vmatpush1.xpose.msra.mxu0 %v841
        %878 = vmatprep.subr.mxu0 0.0
        %879 = vmatpush1.xpose.msra.mxu0 %v844
        %880 = vmatprep.subr.mxu0 0.0
        %881 = vmatpush1.xpose.msra.mxu0 %v847
        %882 = vmatprep.subr.mxu0 0.0
        %883 = vmatpush1.xpose.msra.mxu0 %v850
        %884 = vmatprep.subr.mxu0 0.0
        %885 = vmatpush1.xpose.msra.mxu0 0.0
        %886 = vmatprep.subr.mxu0 0.0
        %887 = vmatpush1.xpose.msra.mxu0 0.0
        %888 = vmatprep.subr.mxu0 0.0
        %889 = vmatpush1.xpose.msra.mxu0 0.0
        %890 = vmatprep.subr.mxu0 0.0
        %891 = vmatpush1.xpose.msra.mxu0 0.0
        %892 = vmatprep.subr.mxu0 0.0
        %893 = vmatpush1.xpose.msra.mxu0 0.0
        %894 = vmatprep.subr.mxu0 0.0
        %895 = vmatpush1.xpose.msra.mxu0 0.0
        %896 = vmatprep.subr.mxu0 0.0
        %897 = vmatpush1.xpose.msra.mxu0 0.0
        %898 = vmatprep.subr.mxu0 0.0
        %899 = vmatpush1.xpose.msra.mxu0 0.0
        %900 = vmatprep.subr.mxu0 0.0
        %901 = vmatpush1.xpose.msra.mxu0 0.0
        %902 = vmatprep.subr.mxu0 0.0
        %903 = vmatpush1.xpose.msra.mxu0 0.0
        %904 = vmatprep.subr.mxu0 0.0
        %905 = vmatpush1.xpose.msra.mxu0 0.0
        %906 = vmatprep.subr.mxu0 0.0
        %907 = vmatpush1.xpose.msra.mxu0 0.0
        %908 = vmatprep.subr.mxu0 0.0
        %909 = vmatpush1.xpose.msra.mxu0 0.0
        %910 = vmatprep.subr.mxu0 0.0
        %911 = vmatpush1.xpose.msra.mxu0 0.0
        %912 = vmatprep.subr.mxu0 0.0
        %913 = vmatpush1.xpose.msra.mxu0 0.0
        %914 = vmatprep.subr.mxu0 0.0
        %915 = vmatpush1.xpose.msra.mxu0 0.0
        %916 = vmatprep.mubr.f32.mxu0 0.0
        %917 = vmatmul.mubr.f32.gmra.mrb[0].mxu0 %v757
        %v918 = vpop.f32.mrb[0].mxu0
        %v919 = vadd.f32 0.0, %v918
        %v920 = vpop.f32.mrb[0].mxu0
        %921 = vmatprep.mubr.f32.mxu0 0.0
        %922 = vmatmul.mubr.f32.gmra.mrb[0].mxu0 %v760
        %v923 = vpop.f32.mrb[0].mxu0
        %v924 = vadd.f32 0.0, %v923
        %v925 = vpop.f32.mrb[0].mxu0
        %926 = vmatprep.mubr.f32.mxu0 0.0
        %927 = vmatmul.mubr.f32.gmra.mrb[0].mxu0 %v763
        %v928 = vpop.f32.mrb[0].mxu0
        %v929 = vadd.f32 0.0, %v928
        %v930 = vpop.f32.mrb[0].mxu0
        %931 = vmatprep.mubr.f32.mxu0 0.0
        %932 = vmatmul.mubr.f32.gmra.mrb[0].mxu0 %v766
        %v933 = vpop.f32.mrb[0].mxu0
        %v934 = vadd.f32 0.0, %v933
        %v935 = vpop.f32.mrb[0].mxu0
        %936 = vmatprep.mubr.f32.mxu0 0.0
        %937 = vmatmul.mubr.f32.gmra.mrb[0].mxu0 %v769
        %v938 = vpop.f32.mrb[0].mxu0
        %v939 = vadd.f32 0.0, %v938
        %v940 = vpop.f32.mrb[0].mxu0
        %941 = vmatprep.mubr.f32.mxu0 0.0
        %942 = vmatmul.mubr.f32.gmra.mrb[0].mxu0 %v772
        %v943 = vpop.f32.mrb[0].mxu0
        %v944 = vadd.f32 0.0, %v943
        %v945 = vpop.f32.mrb[0].mxu0
        %946 = vmatprep.mubr.f32.mxu0 0.0
        %947 = vmatmul.mubr.f32.gmra.mrb[0].mxu0 %v775
        %v948 = vpop.f32.mrb[0].mxu0
        %v949 = vadd.f32 0.0, %v948
        %v950 = vpop.f32.mrb[0].mxu0
        %951 = vmatprep.mubr.f32.mxu0 0.0
        %952 = vmatmul.mubr.f32.gmra.mrb[0].mxu0 %v778
        %v953 = vpop.f32.mrb[0].mxu0
        %v954 = vadd.f32 0.0, %v953
        %v955 = vpop.f32.mrb[0].mxu0
        %956 = vmatprep.mubr.f32.mxu0 0.0
        %957 = vmatmul.mubr.f32.gmra.mrb[0].mxu0 %v781
        %v958 = vpop.f32.mrb[0].mxu0
        %v959 = vadd.f32 0.0, %v958
        %v960 = vpop.f32.mrb[0].mxu0
        %961 = vmatprep.mubr.f32.mxu0 0.0
        %962 = vmatmul.mubr.f32.gmra.mrb[0].mxu0 %v784
        %v963 = vpop.f32.mrb[0].mxu0
        %v964 = vadd.f32 0.0, %v963
        %v965 = vpop.f32.mrb[0].mxu0
        %966 = vmatprep.mubr.f32.mxu0 0.0
        %967 = vmatmul.mubr.f32.gmra.mrb[0].mxu0 %v787
        %v968 = vpop.f32.mrb[0].mxu0
        %v969 = vadd.f32 0.0, %v968
        %v970 = vpop.f32.mrb[0].mxu0
        %971 = vmatprep.mubr.f32.mxu0 0.0
        %972 = vmatmul.mubr.f32.gmra.mrb[0].mxu0 %v790
        %v973 = vpop.f32.mrb[0].mxu0
        %v974 = vadd.f32 0.0, %v973
        %v975 = vpop.f32.mrb[0].mxu0
        %976 = vmatprep.mubr.f32.mxu0 0.0
        %977 = vmatmul.mubr.f32.gmra.mrb[0].mxu0 %v793
        %v978 = vpop.f32.mrb[0].mxu0
        %v979 = vadd.f32 0.0, %v978
        %v980 = vpop.f32.mrb[0].mxu0
        %981 = vmatprep.mubr.f32.mxu0 0.0
        %982 = vmatmul.mubr.f32.gmra.mrb[0].mxu0 %v796
        %v983 = vpop.f32.mrb[0].mxu0
        %v984 = vadd.f32 0.0, %v983
        %v985 = vpop.f32.mrb[0].mxu0
        %986 = vmatprep.mubr.f32.mxu0 0.0
        %987 = vmatmul.mubr.f32.gmra.mrb[0].mxu0 %v799
        %v988 = vpop.f32.mrb[0].mxu0
        %v989 = vadd.f32 0.0, %v988
        %v990 = vpop.f32.mrb[0].mxu0
        %991 = vmatprep.mubr.f32.mxu0 0.0
        %992 = vmatmul.mubr.f32.gmra.mrb[0].mxu0 %v802
        %v993 = vpop.f32.mrb[0].mxu0
        %v994 = vadd.f32 0.0, %v993
        %v995 = vpop.f32.mrb[0].mxu0
        %996 = vdwg.mxu0
        %v997 = vadd.f32 %v740, %v919
        %v998 = vadd.f32 %v741, %v924
        %v999 = vadd.f32 %v742, %v929
        %v1000 = vadd.f32 %v743, %v934
        %v1001 = vadd.f32 %v744, %v939
        %v1002 = vadd.f32 %v745, %v944
        %v1003 = vadd.f32 %v746, %v949
        %v1004 = vadd.f32 %v747, %v954
        %v1005 = vadd.f32 %v748, %v959
        %v1006 = vadd.f32 %v749, %v964
        %v1007 = vadd.f32 %v750, %v969
        %v1008 = vadd.f32 %v751, %v974
        %v1009 = vadd.f32 %v752, %v979
        %v1010 = vadd.f32 %v753, %v984
        %v1011 = vadd.f32 %v754, %v989
        %v1012 = vadd.f32 %v755, %v994
        %1013 = vst [vmem:[#allocation2] sm:$0xff] %v997
        %1014 = vst [vmem:[#allocation2 + $0x8] sm:$0xff] %v998
        %1015 = vst [vmem:[#allocation2 + $0x10] sm:$0xff] %v999
        %1016 = vst [vmem:[#allocation2 + $0x18] sm:$0xff] %v1000
        %1017 = vst [vmem:[#allocation2 + $0x20] sm:$0xff] %v1001
        %1018 = vst [vmem:[#allocation2 + $0x28] sm:$0xff] %v1002
        %1019 = vst [vmem:[#allocation2 + $0x30] sm:$0xff] %v1003
        %1020 = vst [vmem:[#allocation2 + $0x38] sm:$0xff] %v1004
        %1021 = vst [vmem:[#allocation2 + $0x40] sm:$0xff] %v1005
        %1022 = vst [vmem:[#allocation2 + $0x48] sm:$0xff] %v1006
        %1023 = vst [vmem:[#allocation2 + $0x50] sm:$0xff] %v1007
        %1024 = vst [vmem:[#allocation2 + $0x58] sm:$0xff] %v1008
        %1025 = vst [vmem:[#allocation2 + $0x60] sm:$0xff] %v1009
        %1026 = vst [vmem:[#allocation2 + $0x68] sm:$0xff] %v1010
        %1027 = vst [vmem:[#allocation2 + $0x70] sm:$0xff] %v1011
        %1028 = vst [vmem:[#allocation2 + $0x78] sm:$0xff] %v1012
        %v1029 = vld [vmem:[#allocation3] sm:$0xff]
        %v1030 = vld [vmem:[#allocation3 + $0x8] sm:$0xff]
        %v1031 = vld [vmem:[#allocation3 + $0x10] sm:$0xff]
        %v1032 = vld [vmem:[#allocation3 + $0x18] sm:$0xff]
        %v1033 = vld [vmem:[#allocation3 + $0x20] sm:$0xff]
        %v1034 = vld [vmem:[#allocation3 + $0x28] sm:$0xff]
        %v1035 = vld [vmem:[#allocation3 + $0x30] sm:$0xff]
        %v1036 = vld [vmem:[#allocation3 + $0x38] sm:$0xff]
        %v1037 = vld [vmem:[#allocation3 + $0x40] sm:$0xff]
        %v1038 = vld [vmem:[#allocation3 + $0x48] sm:$0xff]
        %v1039 = vld [vmem:[#allocation3 + $0x50] sm:$0xff]
        %v1040 = vld [vmem:[#allocation3 + $0x58] sm:$0xff]
        %v1041 = vld [vmem:[#allocation3 + $0x60] sm:$0xff]
        %v1042 = vld [vmem:[#allocation3 + $0x68] sm:$0xff]
        %v1043 = vld [vmem:[#allocation3 + $0x70] sm:$0xff]
        %v1044 = vld [vmem:[#allocation3 + $0x78] sm:$0xff]
        %v1045 = vsel %vm288, %v724, 0.0
        %1046 = vadd.xlane.f32.xlu0 %v1045
        %v1047 = vpop.xlane.xlu0 %1046
        %v1048 = vsel %vm288, %v725, 0.0
        %1049 = vadd.xlane.f32.xlu0 %v1048
        %v1050 = vpop.xlane.xlu0 %1049
        %v1051 = vsel %vm288, %v726, 0.0
        %1052 = vadd.xlane.f32.xlu0 %v1051
        %v1053 = vpop.xlane.xlu0 %1052
        %v1054 = vsel %vm288, %v727, 0.0
        %1055 = vadd.xlane.f32.xlu0 %v1054
        %v1056 = vpop.xlane.xlu0 %1055
        %v1057 = vsel %vm288, %v728, 0.0
        %1058 = vadd.xlane.f32.xlu0 %v1057
        %v1059 = vpop.xlane.xlu0 %1058
        %v1060 = vsel %vm288, %v729, 0.0
        %1061 = vadd.xlane.f32.xlu0 %v1060
        %v1062 = vpop.xlane.xlu0 %1061
        %v1063 = vsel %vm288, %v730, 0.0
        %1064 = vadd.xlane.f32.xlu0 %v1063
        %v1065 = vpop.xlane.xlu0 %1064
        %v1066 = vsel %vm288, %v731, 0.0
        %1067 = vadd.xlane.f32.xlu0 %v1066
        %v1068 = vpop.xlane.xlu0 %1067
        %v1069 = vsel %vm288, %v732, 0.0
        %1070 = vadd.xlane.f32.xlu0 %v1069
        %v1071 = vpop.xlane.xlu0 %1070
        %v1072 = vsel %vm288, %v733, 0.0
        %1073 = vadd.xlane.f32.xlu0 %v1072
        %v1074 = vpop.xlane.xlu0 %1073
        %v1075 = vsel %vm288, %v734, 0.0
        %1076 = vadd.xlane.f32.xlu0 %v1075
        %v1077 = vpop.xlane.xlu0 %1076
        %v1078 = vsel %vm288, %v735, 0.0
        %1079 = vadd.xlane.f32.xlu0 %v1078
        %v1080 = vpop.xlane.xlu0 %1079
        %v1081 = vsel %vm288, %v736, 0.0
        %1082 = vadd.xlane.f32.xlu0 %v1081
        %v1083 = vpop.xlane.xlu0 %1082
        %v1084 = vsel %vm288, %v737, 0.0
        %1085 = vadd.xlane.f32.xlu0 %v1084
        %v1086 = vpop.xlane.xlu0 %1085
        %v1087 = vsel %vm288, %v738, 0.0
        %1088 = vadd.xlane.f32.xlu0 %v1087
        %v1089 = vpop.xlane.xlu0 %1088
        %v1090 = vsel %vm288, %v739, 0.0
        %1091 = vadd.xlane.f32.xlu0 %v1090
        %v1092 = vpop.xlane.xlu0 %1091
        %v1093 = vadd.f32 %v1029, %v1047
        %v1094 = vadd.f32 %v1030, %v1050
        %v1095 = vadd.f32 %v1031, %v1053
        %v1096 = vadd.f32 %v1032, %v1056
        %v1097 = vadd.f32 %v1033, %v1059
        %v1098 = vadd.f32 %v1034, %v1062
        %v1099 = vadd.f32 %v1035, %v1065
        %v1100 = vadd.f32 %v1036, %v1068
        %v1101 = vadd.f32 %v1037, %v1071
        %v1102 = vadd.f32 %v1038, %v1074
        %v1103 = vadd.f32 %v1039, %v1077
        %v1104 = vadd.f32 %v1040, %v1080
        %v1105 = vadd.f32 %v1041, %v1083
        %v1106 = vadd.f32 %v1042, %v1086
        %v1107 = vadd.f32 %v1043, %v1089
        %v1108 = vadd.f32 %v1044, %v1092
        %vm1109 = vcmask 7168
        %1110 = vst.msk [vmem:[#allocation3] sm:$0xff] %vm1109, %v1093
        %1111 = vst.msk [vmem:[#allocation3 + $0x8] sm:$0xff] %vm1109, %v1094
        %1112 = vst.msk [vmem:[#allocation3 + $0x10] sm:$0xff] %vm1109, %v1095
        %1113 = vst.msk [vmem:[#allocation3 + $0x18] sm:$0xff] %vm1109, %v1096
        %1114 = vst.msk [vmem:[#allocation3 + $0x20] sm:$0xff] %vm1109, %v1097
        %1115 = vst.msk [vmem:[#allocation3 + $0x28] sm:$0xff] %vm1109, %v1098
        %1116 = vst.msk [vmem:[#allocation3 + $0x30] sm:$0xff] %vm1109, %v1099
        %1117 = vst.msk [vmem:[#allocation3 + $0x38] sm:$0xff] %vm1109, %v1100
        %1118 = vst.msk [vmem:[#allocation3 + $0x40] sm:$0xff] %vm1109, %v1101
        %1119 = vst.msk [vmem:[#allocation3 + $0x48] sm:$0xff] %vm1109, %v1102
        %1120 = vst.msk [vmem:[#allocation3 + $0x50] sm:$0xff] %vm1109, %v1103
        %1121 = vst.msk [vmem:[#allocation3 + $0x58] sm:$0xff] %vm1109, %v1104
        %1122 = vst.msk [vmem:[#allocation3 + $0x60] sm:$0xff] %vm1109, %v1105
        %1123 = vst.msk [vmem:[#allocation3 + $0x68] sm:$0xff] %vm1109, %v1106
        %1124 = vst.msk [vmem:[#allocation3 + $0x70] sm:$0xff] %vm1109, %v1107
        %1125 = vst.msk [vmem:[#allocation3 + $0x78] sm:$0xff] %vm1109, %v1108
        // Predicated region
        $region41: #{tpu_custom_call.1} parent=35 // pred_check
          %p1126 = pneg %p219
        $region42: #{tpu_custom_call.1} parent=35 // pred_check_branch
          %1128 = sbr.rel (%p1126) target = $region44
        $region43: #{tpu_custom_call.1} parent=35 // pred_region
          %v1129 = vld [vmem:[#allocation2] sm:$0xff]
          %v1130 = vld [vmem:[#allocation2 + $0x8] sm:$0xff]
          %v1131 = vld [vmem:[#allocation2 + $0x10] sm:$0xff]
          %v1132 = vld [vmem:[#allocation2 + $0x18] sm:$0xff]
          %v1133 = vld [vmem:[#allocation2 + $0x20] sm:$0xff]
          %v1134 = vld [vmem:[#allocation2 + $0x28] sm:$0xff]
          %v1135 = vld [vmem:[#allocation2 + $0x30] sm:$0xff]
          %v1136 = vld [vmem:[#allocation2 + $0x38] sm:$0xff]
          %v1137 = vld [vmem:[#allocation2 + $0x40] sm:$0xff]
          %v1138 = vld [vmem:[#allocation2 + $0x48] sm:$0xff]
          %v1139 = vld [vmem:[#allocation2 + $0x50] sm:$0xff]
          %v1140 = vld [vmem:[#allocation2 + $0x58] sm:$0xff]
          %v1141 = vld [vmem:[#allocation2 + $0x60] sm:$0xff]
          %v1142 = vld [vmem:[#allocation2 + $0x68] sm:$0xff]
          %v1143 = vld [vmem:[#allocation2 + $0x70] sm:$0xff]
          %v1144 = vld [vmem:[#allocation2 + $0x78] sm:$0xff]
          %v1145 = vld [vmem:[#allocation3] sm:$0xff]
          %v1146 = vld [vmem:[#allocation3 + $0x8] sm:$0xff]
          %v1147 = vld [vmem:[#allocation3 + $0x10] sm:$0xff]
          %v1148 = vld [vmem:[#allocation3 + $0x18] sm:$0xff]
          %v1149 = vld [vmem:[#allocation3 + $0x20] sm:$0xff]
          %v1150 = vld [vmem:[#allocation3 + $0x28] sm:$0xff]
          %v1151 = vld [vmem:[#allocation3 + $0x30] sm:$0xff]
          %v1152 = vld [vmem:[#allocation3 + $0x38] sm:$0xff]
          %v1153 = vld [vmem:[#allocation3 + $0x40] sm:$0xff]
          %v1154 = vld [vmem:[#allocation3 + $0x48] sm:$0xff]
          %v1155 = vld [vmem:[#allocation3 + $0x50] sm:$0xff]
          %v1156 = vld [vmem:[#allocation3 + $0x58] sm:$0xff]
          %v1157 = vld [vmem:[#allocation3 + $0x60] sm:$0xff]
          %v1158 = vld [vmem:[#allocation3 + $0x68] sm:$0xff]
          %v1159 = vld [vmem:[#allocation3 + $0x70] sm:$0xff]
          %v1160 = vld [vmem:[#allocation3 + $0x78] sm:$0xff]
          %v1161 = vld [vmem:[%s3] sm:$0xff]
          %v1162 = vld [vmem:[%s3 + $0x8] sm:$0xff]
          %v1163 = vld [vmem:[%s3 + $0x10] sm:$0xff]
          %v1164 = vld [vmem:[%s3 + $0x18] sm:$0xff]
          %v1165 = vld [vmem:[%s3 + $0x20] sm:$0xff]
          %v1166 = vld [vmem:[%s3 + $0x28] sm:$0xff]
          %v1167 = vld [vmem:[%s3 + $0x30] sm:$0xff]
          %v1168 = vld [vmem:[%s3 + $0x38] sm:$0xff]
          %v1169 = vld [vmem:[%s3 + $0x40] sm:$0xff]
          %v1170 = vld [vmem:[%s3 + $0x48] sm:$0xff]
          %v1171 = vld [vmem:[%s3 + $0x50] sm:$0xff]
          %v1172 = vld [vmem:[%s3 + $0x58] sm:$0xff]
          %v1173 = vld [vmem:[%s3 + $0x60] sm:$0xff]
          %v1174 = vld [vmem:[%s3 + $0x68] sm:$0xff]
          %v1175 = vld [vmem:[%s3 + $0x70] sm:$0xff]
          %v1176 = vld [vmem:[%s3 + $0x78] sm:$0xff]
          %1178 = vset.pattern.permute.xlu0 0
          %1179 = vperm.xlu0 %1178, %v1145
          %v1180 = vpop.permute.xlu0 %1179
          %1183 = vset.pattern.permute.xlu0 0
          %1184 = vperm.xlu0 %1183, %v1146
          %v1185 = vpop.permute.xlu0 %1184
          %1188 = vset.pattern.permute.xlu0 0
          %1189 = vperm.xlu0 %1188, %v1147
          %v1190 = vpop.permute.xlu0 %1189
          %1193 = vset.pattern.permute.xlu0 0
          %1194 = vperm.xlu0 %1193, %v1148
          %v1195 = vpop.permute.xlu0 %1194
          %1198 = vset.pattern.permute.xlu0 0
          %1199 = vperm.xlu0 %1198, %v1149
          %v1200 = vpop.permute.xlu0 %1199
          %1203 = vset.pattern.permute.xlu0 0
          %1204 = vperm.xlu0 %1203, %v1150
          %v1205 = vpop.permute.xlu0 %1204
          %1208 = vset.pattern.permute.xlu0 0
          %1209 = vperm.xlu0 %1208, %v1151
          %v1210 = vpop.permute.xlu0 %1209
          %1213 = vset.pattern.permute.xlu0 0
          %1214 = vperm.xlu0 %1213, %v1152
          %v1215 = vpop.permute.xlu0 %1214
          %1218 = vset.pattern.permute.xlu0 0
          %1219 = vperm.xlu0 %1218, %v1153
          %v1220 = vpop.permute.xlu0 %1219
          %1223 = vset.pattern.permute.xlu0 0
          %1224 = vperm.xlu0 %1223, %v1154
          %v1225 = vpop.permute.xlu0 %1224
          %1228 = vset.pattern.permute.xlu0 0
          %1229 = vperm.xlu0 %1228, %v1155
          %v1230 = vpop.permute.xlu0 %1229
          %1233 = vset.pattern.permute.xlu0 0
          %1234 = vperm.xlu0 %1233, %v1156
          %v1235 = vpop.permute.xlu0 %1234
          %1238 = vset.pattern.permute.xlu0 0
          %1239 = vperm.xlu0 %1238, %v1157
          %v1240 = vpop.permute.xlu0 %1239
          %1243 = vset.pattern.permute.xlu0 0
          %1244 = vperm.xlu0 %1243, %v1158
          %v1245 = vpop.permute.xlu0 %1244
          %1248 = vset.pattern.permute.xlu0 0
          %1249 = vperm.xlu0 %1248, %v1159
          %v1250 = vpop.permute.xlu0 %1249
          %1253 = vset.pattern.permute.xlu0 0
          %1254 = vperm.xlu0 %1253, %v1160
          %v1255 = vpop.permute.xlu0 %1254
          %v1257 = vmul.f32 %v1180, %v1161
          %v1258 = vmul.f32 %v1185, %v1162
          %v1259 = vmul.f32 %v1190, %v1163
          %v1260 = vmul.f32 %v1195, %v1164
          %v1261 = vmul.f32 %v1200, %v1165
          %v1262 = vmul.f32 %v1205, %v1166
          %v1263 = vmul.f32 %v1210, %v1167
          %v1264 = vmul.f32 %v1215, %v1168
          %v1265 = vmul.f32 %v1220, %v1169
          %v1266 = vmul.f32 %v1225, %v1170
          %v1267 = vmul.f32 %v1230, %v1171
          %v1268 = vmul.f32 %v1235, %v1172
          %v1269 = vmul.f32 %v1240, %v1173
          %v1270 = vmul.f32 %v1245, %v1174
          %v1271 = vmul.f32 %v1250, %v1175
          %v1272 = vmul.f32 %v1255, %v1176
          %v1273 = vsub.f32 %v1129, %v1257
          %v1274 = vsub.f32 %v1130, %v1258
          %v1275 = vsub.f32 %v1131, %v1259
          %v1276 = vsub.f32 %v1132, %v1260
          %v1277 = vsub.f32 %v1133, %v1261
          %v1278 = vsub.f32 %v1134, %v1262
          %v1279 = vsub.f32 %v1135, %v1263
          %v1280 = vsub.f32 %v1136, %v1264
          %v1281 = vsub.f32 %v1137, %v1265
          %v1282 = vsub.f32 %v1138, %v1266
          %v1283 = vsub.f32 %v1139, %v1267
          %v1284 = vsub.f32 %v1140, %v1268
          %v1285 = vsub.f32 %v1141, %v1269
          %v1286 = vsub.f32 %v1142, %v1270
          %v1287 = vsub.f32 %v1143, %v1271
          %v1288 = vsub.f32 %v1144, %v1272
          %v1289 = vmul.f32 %v1273, %v1273
          %v1290 = vmul.f32 %v1274, %v1274
          %v1291 = vmul.f32 %v1275, %v1275
          %v1292 = vmul.f32 %v1276, %v1276
          %v1293 = vmul.f32 %v1277, %v1277
          %v1294 = vmul.f32 %v1278, %v1278
          %v1295 = vmul.f32 %v1279, %v1279
          %v1296 = vmul.f32 %v1280, %v1280
          %v1297 = vmul.f32 %v1281, %v1281
          %v1298 = vmul.f32 %v1282, %v1282
          %v1299 = vmul.f32 %v1283, %v1283
          %v1300 = vmul.f32 %v1284, %v1284
          %v1301 = vmul.f32 %v1285, %v1285
          %v1302 = vmul.f32 %v1286, %v1286
          %v1303 = vmul.f32 %v1287, %v1287
          %v1304 = vmul.f32 %v1288, %v1288
          %1305 = vadd.xlane.f32.xlu0 %v1289
          %v1306 = vpop.xlane.xlu0 %1305
          %1307 = vadd.xlane.f32.xlu0 %v1290
          %v1308 = vpop.xlane.xlu0 %1307
          %1309 = vadd.xlane.f32.xlu0 %v1291
          %v1310 = vpop.xlane.xlu0 %1309
          %1311 = vadd.xlane.f32.xlu0 %v1292
          %v1312 = vpop.xlane.xlu0 %1311
          %1313 = vadd.xlane.f32.xlu0 %v1293
          %v1314 = vpop.xlane.xlu0 %1313
          %1315 = vadd.xlane.f32.xlu0 %v1294
          %v1316 = vpop.xlane.xlu0 %1315
          %1317 = vadd.xlane.f32.xlu0 %v1295
          %v1318 = vpop.xlane.xlu0 %1317
          %1319 = vadd.xlane.f32.xlu0 %v1296
          %v1320 = vpop.xlane.xlu0 %1319
          %1321 = vadd.xlane.f32.xlu0 %v1297
          %v1322 = vpop.xlane.xlu0 %1321
          %1323 = vadd.xlane.f32.xlu0 %v1298
          %v1324 = vpop.xlane.xlu0 %1323
          %1325 = vadd.xlane.f32.xlu0 %v1299
          %v1326 = vpop.xlane.xlu0 %1325
          %1327 = vadd.xlane.f32.xlu0 %v1300
          %v1328 = vpop.xlane.xlu0 %1327
          %1329 = vadd.xlane.f32.xlu0 %v1301
          %v1330 = vpop.xlane.xlu0 %1329
          %1331 = vadd.xlane.f32.xlu0 %v1302
          %v1332 = vpop.xlane.xlu0 %1331
          %1333 = vadd.xlane.f32.xlu0 %v1303
          %v1334 = vpop.xlane.xlu0 %1333
          %1335 = vadd.xlane.f32.xlu0 %v1304
          %v1336 = vpop.xlane.xlu0 %1335
          %v1337 = vmax.f32 %v1306, 1e-24
          %v1338 = vmax.f32 %v1308, 1e-24
          %v1339 = vmax.f32 %v1310, 1e-24
          %v1340 = vmax.f32 %v1312, 1e-24
          %v1341 = vmax.f32 %v1314, 1e-24
          %v1342 = vmax.f32 %v1316, 1e-24
          %v1343 = vmax.f32 %v1318, 1e-24
          %v1344 = vmax.f32 %v1320, 1e-24
          %v1345 = vmax.f32 %v1322, 1e-24
          %v1346 = vmax.f32 %v1324, 1e-24
          %v1347 = vmax.f32 %v1326, 1e-24
          %v1348 = vmax.f32 %v1328, 1e-24
          %v1349 = vmax.f32 %v1330, 1e-24
          %v1350 = vmax.f32 %v1332, 1e-24
          %v1351 = vmax.f32 %v1334, 1e-24
          %v1352 = vmax.f32 %v1336, 1e-24
          %v1353 = vrsqrt.pop %v1337
          %v1354 = vrsqrt.pop %v1338
          %v1355 = vrsqrt.pop %v1339
          %v1356 = vrsqrt.pop %v1340
          %v1357 = vrsqrt.pop %v1341
          %v1358 = vrsqrt.pop %v1342
          %v1359 = vrsqrt.pop %v1343
          %v1360 = vrsqrt.pop %v1344
          %v1361 = vrsqrt.pop %v1345
          %v1362 = vrsqrt.pop %v1346
          %v1363 = vrsqrt.pop %v1347
          %v1364 = vrsqrt.pop %v1348
          %v1365 = vrsqrt.pop %v1349
          %v1366 = vrsqrt.pop %v1350
          %v1367 = vrsqrt.pop %v1351
          %v1368 = vrsqrt.pop %v1352
          %v1369 = vmul.f32 %v1273, %v1353
          %v1370 = vmul.f32 %v1274, %v1354
          %v1371 = vmul.f32 %v1275, %v1355
          %v1372 = vmul.f32 %v1276, %v1356
          %v1373 = vmul.f32 %v1277, %v1357
          %v1374 = vmul.f32 %v1278, %v1358
          %v1375 = vmul.f32 %v1279, %v1359
          %v1376 = vmul.f32 %v1280, %v1360
          %v1377 = vmul.f32 %v1281, %v1361
          %v1378 = vmul.f32 %v1282, %v1362
          %v1379 = vmul.f32 %v1283, %v1363
          %v1380 = vmul.f32 %v1284, %v1364
          %v1381 = vmul.f32 %v1285, %v1365
          %v1382 = vmul.f32 %v1286, %v1366
          %v1383 = vmul.f32 %v1287, %v1367
          %v1384 = vmul.f32 %v1288, %v1368
          %v1385 = vmul.f32 %v1369, %v1369
          %v1386 = vmul.f32 %v1370, %v1370
          %v1387 = vmul.f32 %v1371, %v1371
          %v1388 = vmul.f32 %v1372, %v1372
          %v1389 = vmul.f32 %v1373, %v1373
          %v1390 = vmul.f32 %v1374, %v1374
          %v1391 = vmul.f32 %v1375, %v1375
          %v1392 = vmul.f32 %v1376, %v1376
          %v1393 = vmul.f32 %v1377, %v1377
          %v1394 = vmul.f32 %v1378, %v1378
          %v1395 = vmul.f32 %v1379, %v1379
          %v1396 = vmul.f32 %v1380, %v1380
          %v1397 = vmul.f32 %v1381, %v1381
          %v1398 = vmul.f32 %v1382, %v1382
          %v1399 = vmul.f32 %v1383, %v1383
          %v1400 = vmul.f32 %v1384, %v1384
          %v1401 = vadd.f32 %v1385, %v1386
          %v1402 = vadd.f32 %v1401, %v1387
          %v1403 = vadd.f32 %v1402, %v1388
          %v1404 = vadd.f32 %v1403, %v1389
          %v1405 = vadd.f32 %v1404, %v1390
          %v1406 = vadd.f32 %v1405, %v1391
          %v1407 = vadd.f32 %v1406, %v1392
          %v1408 = vadd.f32 %v1407, %v1393
          %v1409 = vadd.f32 %v1408, %v1394
          %v1410 = vadd.f32 %v1409, %v1395
          %v1411 = vadd.f32 %v1410, %v1396
          %v1412 = vadd.f32 %v1411, %v1397
          %v1413 = vadd.f32 %v1412, %v1398
          %v1414 = vadd.f32 %v1413, %v1399
          %v1415 = vadd.f32 %v1414, %v1400
          %1416 = vadd.xlane.f32.xlu0 %v1415
          %v1417 = vpop.xlane.xlu0 %1416
          %v1418 = vrot.slane %v1417, 4
          %v1419 = vadd.f32 %v1417, %v1418
          %v1420 = vrot.slane %v1419, 2
          %v1421 = vadd.f32 %v1419, %v1420
          %v1422 = vrot.slane %v1421, 1
          %v1423 = vadd.f32 %v1421, %v1422
          %s1424 = vtos %v1423
          %s1425 = smax.f32 %s1424, 1e-24
          %v1426 = vstv %s1425
          %v1427 = vrsqrt.pop %v1426
          %s1428 = vtos %v1427
          %v1429 = vstv %s1428
          %v1430 = vmul.f32 %v1369, %v1429
          %v1431 = vmul.f32 %v1370, %v1429
          %v1432 = vmul.f32 %v1371, %v1429
          %v1433 = vmul.f32 %v1372, %v1429
          %1434 = vst [vmem:[%s210] sm:$0xff] %v1430
          %1435 = vst [vmem:[%s210 + $0x8] sm:$0xff] %v1431
          %1436 = vst [vmem:[%s210 + $0x10] sm:$0xff] %v1432
          %1437 = vst [vmem:[%s210 + $0x18] sm:$0xff] %v1433
        $region44: #{tpu_custom_call.1} parent=35 // pred_fallthru
          _
        %s1438 = sand.u32 %s129, 1
        %s1439 = scalar_lea.sflag [#allocation5], %s1438
        %s1440 = sand.u32 %s129, 1
        %s1441 = smul.addr %s1440, 32
        %s1442 = scalar_lea.vmem [#allocation4], %s1441
        // Predicated region
        $region45: #{tpu_custom_call.1} parent=35 // pred_check
          %p1443 = pneg %p139
        $region46: #{tpu_custom_call.1} parent=35 // pred_check_branch
          %1445 = sbr.rel (%p1443) target = $region48
        $region47: #{tpu_custom_call.1} parent=35 // pred_region
          %s1447 = ssub.s32 512, 512
          %1448 = vsyncadd %s1439, %s1447
          %s1449 = smul.addr %s22, 4
          %s1450 = smul.addr %s1449, 128
          %s1451 = scalar_lea.hbm %s4, %s1450
          %s1452 = sshll.u32 %s1442, 4
          %s1453 = int_to_ptr.vmem [resolvable:$true] %s1452
          %1458 = dma.vmem_to_hbm [thread:$0]  %s1453, 512, %s1451, %s1439, 128, 128, 8
        $region48: #{tpu_custom_call.1} parent=35 // pred_fallthru
          _
      $region36: #{tpu_custom_call.1} parent=5 // pred_fallthru
        _
      %p1459 = scmp.le.s32.totalorder 2, %s13
      // Predicated region
      $region49: #{tpu_custom_call.1} parent=5 // pred_check
        %p1460 = pneg %p1459
      $region50: #{tpu_custom_call.1} parent=5 // pred_check_branch
        %1462 = sbr.rel (%p1460) target = $region52
      $region51: #{tpu_custom_call.1} parent=5 // pred_region
        %s1463 = ssub.s32 %s13, 2
        // Predicated region
        $region53: #{tpu_custom_call.1} parent=51 // pred_check
          %p1464 = pneg %p145
        $region54: #{tpu_custom_call.1} parent=51 // pred_check_branch
          %1466 = sbr.rel (%p1464) target = $region56
        $region55: #{tpu_custom_call.1} parent=51 // pred_region
          %s1467 = sand.u32 %s130, 1
          %s1468 = scalar_lea.sflag [#allocation5], %s1467
          %s1469 = sand.u32 %s130, 1
          %s1470 = smul.addr %s1469, 32
          %s1471 = scalar_lea.vmem [#allocation4], %s1470
          %1472 = dma.done %s1468, 512
        $region56: #{tpu_custom_call.1} parent=51 // pred_fallthru
          _
      $region52: #{tpu_custom_call.1} parent=5 // pred_fallthru
        _
    $region6: #{tpu_custom_call.1} parent=1 // loop_footer
      %s17 = sadd.s32 1, %s13
    $region7: #{tpu_custom_call.1} parent=1 // loop_footer_branch
      %12 = sbr.rel target = $region3
    $region8: #{tpu_custom_call.1} parent=1 // loop_exit
      _
    %1473 = vsyncpa [#allocation5], 1
    %s1474 = scalar_lea.sflag [#allocation5], 1
    %1475 = vsyncpa %s1474, 1

</llo_original>
